<compile_context>
chip_gen: v6e
topology: v6e:2x2x1
jax: 0.10.0
libtpu: 0.0.40
codegen_flags: <defaults>
</compile_context>

<pallas_src>
import functools

import jax
import jax.numpy as jnp
import numpy as np
from jax.experimental import pallas as pl
from jax.experimental.pallas import tpu as pltpu

# ---------------------------------------------------------------------------
# Model configuration (small, MNIST-RNN-like shapes).
# ---------------------------------------------------------------------------
BATCH = 8
SEQ_LEN = 8          # number of timesteps (rows of the "image")
INPUT_SIZE = 32      # features per timestep
HIDDEN_SIZE = 32     # LSTM hidden size  (4*H = 128 -> one full lane register)
LAYERS_NUM = 2
CLASSES_NUM = 10
PADDED_CLASSES = 128  # lane-dense FC output; sliced back to CLASSES_NUM outside the kernel


def make_kernel(layers_num: int, hidden_size: int, seq_len: int, batch: int):
    """Builds the Pallas kernel body (static unroll over layers and timesteps)."""
    H = hidden_size
    T = seq_len
    B = batch

    def kernel(*refs):
        # refs = (x_tm, [wih_T, whh_T, bias] * layers_num, fc_w_T, fc_b, out, seq_scratch)
        x_ref = refs[0]                           # (T*B, D_in)   f32, time-major flat
        fcw_ref = refs[1 + 3 * layers_num]        # (H, 128)      bf16, zero-padded
        fcb_ref = refs[2 + 3 * layers_num]        # (1, 128)      f32,  zero-padded
        out_ref = refs[3 + 3 * layers_num]        # (B, 128)      f32
        seq_scratch = refs[4 + 3 * layers_num]    # VMEM (T*B, H) f32 inter-layer buffer

        h = jnp.zeros((B, H), jnp.float32)
        for layer in range(layers_num):
            wih = refs[1 + 3 * layer][...]        # (D_in_or_H, 4H) bf16
            whh = refs[2 + 3 * layer][...]        # (H, 4H)         bf16
            bias = refs[3 + 3 * layer][...]       # (1, 4H)         f32

            # ---- Hoisted input projection for ALL timesteps at once (one GEMM) ----
            if layer == 0:
                xflat = x_ref[...].astype(jnp.bfloat16)           # (T*B, D_in)
            else:
                xflat = seq_scratch[...].astype(jnp.bfloat16)     # (T*B, H)
            xproj = (
                jnp.dot(xflat, wih, preferred_element_type=jnp.float32) + bias
            )                                                     # (T*B, 4H) f32

            # ---- Serial recurrence: only h @ whh + elementwise on the critical path ----
            h = jnp.zeros((B, H), jnp.float32)
            c = jnp.zeros((B, H), jnp.float32)
            last_layer = layer == layers_num - 1
            for t in range(T):
                gates = xproj[t * B:(t + 1) * B, :] + jnp.dot(
                    h.astype(jnp.bfloat16), whh,
                    preferred_element_type=jnp.float32,
                )                                                 # (B, 4H), order i,f,g,o
                # Two full-width EUP passes instead of four sliced ones.
                sig = jax.nn.sigmoid(gates)
                tg = jnp.tanh(gates)
                i_g = sig[:, 0 * H:1 * H]
                f_g = sig[:, 1 * H:2 * H]
                g_g = tg[:, 2 * H:3 * H]
                o_g = sig[:, 3 * H:4 * H]
                c = f_g * c + i_g * g_g
                h = o_g * jnp.tanh(c)
                if not last_layer:
                    # time-major, sublane-aligned static store for the next layer's GEMM
                    seq_scratch[t * B:(t + 1) * B, :] = h

        # fc(out[:, -1, :]) : h is the last-timestep hidden of the last layer.
        # Output is lane-padded to 128 (dense, unmasked stores); sliced outside.
        out_ref[...] = (
            jnp.dot(h.astype(jnp.bfloat16), fcw_ref[...],
                    preferred_element_type=jnp.float32)
            + fcb_ref[...]
        )

    return kernel


def init_params(key, input_size, hidden_size, layers_num, classes_num):
    """Deterministic f32 init mimicking PyTorch's uniform(-1/sqrt(H), 1/sqrt(H))."""
    k = 1.0 / np.sqrt(hidden_size)
    params = {"layers": [], "fc_w": None, "fc_b": None}
    for layer in range(layers_num):
        d_in = input_size if layer == 0 else hidden_size
        key, k1, k2, k3, k4 = jax.random.split(key, 5)
        w_ih_t = jax.random.uniform(k1, (d_in, 4 * hidden_size), jnp.float32, -k, k)
        w_hh_t = jax.random.uniform(k2, (hidden_size, 4 * hidden_size), jnp.float32, -k, k)
        b_ih = jax.random.uniform(k3, (4 * hidden_size,), jnp.float32, -k, k)
        b_hh = jax.random.uniform(k4, (4 * hidden_size,), jnp.float32, -k, k)
        bias = (b_ih + b_hh).reshape(1, 4 * hidden_size)
        params["layers"].append((w_ih_t, w_hh_t, bias))
    key, k1, k2 = jax.random.split(key, 3)
    kf = 1.0 / np.sqrt(hidden_size)
    params["fc_w"] = jax.random.uniform(k1, (hidden_size, classes_num), jnp.float32, -kf, kf)
    params["fc_b"] = jax.random.uniform(k2, (1, classes_num), jnp.float32, -kf, kf)
    return params


def pack_device_weights(params, hidden_size, classes_num, padded_classes):
    """Flat weight list for the kernel: bf16 matmul operands, f32 biases, lane-padded FC."""
    flat = []
    for (wih, whh, b) in params["layers"]:
        flat += [wih.astype(jnp.bfloat16), whh.astype(jnp.bfloat16), b.astype(jnp.float32)]
    fc_w_pad = jnp.zeros((hidden_size, padded_classes), jnp.float32)
    fc_w_pad = fc_w_pad.at[:, :classes_num].set(params["fc_w"]).astype(jnp.bfloat16)
    fc_b_pad = jnp.zeros((1, padded_classes), jnp.float32)
    fc_b_pad = fc_b_pad.at[:, :classes_num].set(params["fc_b"])
    flat += [fc_w_pad, fc_b_pad]
    return tuple(flat)


@functools.partial(
    jax.jit,
    static_argnames=("layers_num", "hidden_size", "classes_num", "padded_classes"),
)
def recunet_forward(x, flat_weights, *, layers_num, hidden_size, classes_num,
                    padded_classes=PADDED_CLASSES):
    B, T, D = x.shape
    # Time-major, flattened (T*B, D): the hoisted layer-0 GEMM needs no in-kernel reshape,
    # and per-timestep slices are contiguous, sublane-aligned row blocks.
    x_tm = jnp.transpose(x, (1, 0, 2)).reshape(T * B, D)
    inputs = [x_tm] + list(flat_weights)
    kernel = make_kernel(layers_num, hidden_size, T, B)
    out_padded = pl.pallas_call(
        kernel,
        out_shape=jax.ShapeDtypeStruct((B, padded_classes), jnp.float32),
        in_specs=[pl.BlockSpec(memory_space=pltpu.MemorySpace.VMEM)] * len(inputs),
        out_specs=pl.BlockSpec(memory_space=pltpu.MemorySpace.VMEM),
        scratch_shapes=[pltpu.VMEM((T * B, hidden_size), jnp.float32)],
    )(*inputs)
    return out_padded[:, :classes_num]


# ---------------------------------------------------------------------------
# References for correctness checks.
# ---------------------------------------------------------------------------
def recunet_reference_bf16(x, params, hidden_size, layers_num):
    """Pure-JAX reference mirroring the kernel math (bf16 matmul operands, f32 accum)."""
    H = hidden_size
    B, T, _ = x.shape
    seq = jnp.transpose(x, (1, 0, 2)).reshape(T * B, -1)   # time-major flat
    h = jnp.zeros((B, H), jnp.float32)
    for layer in range(layers_num):
        wih, whh, bias = params["layers"][layer]
        wih_b = wih.astype(jnp.bfloat16)
        whh_b = whh.astype(jnp.bfloat16)
        xproj = jnp.dot(seq.astype(jnp.bfloat16), wih_b,
                        preferred_element_type=jnp.float32) + bias
        h = jnp.zeros((B, H), jnp.float32)
        c = jnp.zeros((B, H), jnp.float32)
        outs = []
        for t in range(T):
            gates = xproj[t * B:(t + 1) * B, :] + jnp.dot(
                h.astype(jnp.bfloat16), whh_b, preferred_element_type=jnp.float32)
            i_g = jax.nn.sigmoid(gates[:, 0 * H:1 * H])
            f_g = jax.nn.sigmoid(gates[:, 1 * H:2 * H])
            g_g = jnp.tanh(gates[:, 2 * H:3 * H])
            o_g = jax.nn.sigmoid(gates[:, 3 * H:4 * H])
            c = f_g * c + i_g * g_g
            h = o_g * jnp.tanh(c)
            outs.append(h)
        if layer < layers_num - 1:
            seq = jnp.concatenate(outs, axis=0)            # (T*B, H), time-major
    fcw_b = params["fc_w"].astype(jnp.bfloat16)
    return jnp.dot(h.astype(jnp.bfloat16), fcw_b,
                   preferred_element_type=jnp.float32) + params["fc_b"]


def recunet_reference_f32(x, params, hidden_size, layers_num):
    """Full-precision reference of the original module semantics (loose sanity check)."""
    H = hidden_size
    seq = x.astype(jnp.float32)
    B, T, _ = seq.shape
    h = jnp.zeros((B, H), jnp.float32)
    for layer in range(layers_num):
        wih, whh, bias = params["layers"][layer]
        h = jnp.zeros((B, H), jnp.float32)
        c = jnp.zeros((B, H), jnp.float32)
        outs = []
        for t in range(T):
            gates = seq[:, t, :] @ wih + h @ whh + bias
            i_g = jax.nn.sigmoid(gates[:, 0 * H:1 * H])
            f_g = jax.nn.sigmoid(gates[:, 1 * H:2 * H])
            g_g = jnp.tanh(gates[:, 2 * H:3 * H])
            o_g = jax.nn.sigmoid(gates[:, 3 * H:4 * H])
            c = f_g * c + i_g * g_g
            h = o_g * jnp.tanh(c)
            outs.append(h)
        if layer < layers_num - 1:
            seq = jnp.stack(outs, axis=1)
    return h @ params["fc_w"] + params["fc_b"]


if __name__ == "__main__":
    key = jax.random.PRNGKey(0)
    key, xk = jax.random.split(key)
    x = jax.random.normal(xk, (BATCH, SEQ_LEN, INPUT_SIZE), jnp.float32)

    params = init_params(key, INPUT_SIZE, HIDDEN_SIZE, LAYERS_NUM, CLASSES_NUM)
    flat_weights = pack_device_weights(params, HIDDEN_SIZE, CLASSES_NUM, PADDED_CLASSES)

    out = recunet_forward(
        x,
        flat_weights,
        layers_num=LAYERS_NUM,
        hidden_size=HIDDEN_SIZE,
        classes_num=CLASSES_NUM,
        padded_classes=PADDED_CLASSES,
    )
    out = jax.block_until_ready(out)
    assert out.shape == (BATCH, CLASSES_NUM)

    # Strict check against a reference that uses the same bf16-matmul / f32-accum math.
    ref_bf16 = recunet_reference_bf16(x, params, HIDDEN_SIZE, LAYERS_NUM)
    assert np.allclose(np.asarray(out), np.asarray(ref_bf16), atol=2e-3, rtol=2e-3)

    # Loose check against the full-f32 semantics of the original PyTorch module.
    ref_f32 = recunet_reference_f32(x, params, HIDDEN_SIZE, LAYERS_NUM)
    assert np.allclose(np.asarray(out), np.asarray(ref_f32), atol=1e-1, rtol=0)

    print("KERNEL_OK")
</pallas_src>

<mosaic_0001>
module attributes {stable_mosaic.version = 11 : i64} {
  func.func @kernel(%arg0: memref<64x32xf32, #tpu.memory_space<vmem>>, %arg1: memref<32x128xbf16, #tpu.memory_space<vmem>>, %arg2: memref<32x128xbf16, #tpu.memory_space<vmem>>, %arg3: memref<1x128xf32, #tpu.memory_space<vmem>>, %arg4: memref<32x128xbf16, #tpu.memory_space<vmem>>, %arg5: memref<32x128xbf16, #tpu.memory_space<vmem>>, %arg6: memref<1x128xf32, #tpu.memory_space<vmem>>, %arg7: memref<32x128xbf16, #tpu.memory_space<vmem>>, %arg8: memref<1x128xf32, #tpu.memory_space<vmem>>, %arg9: memref<8x128xf32, #tpu.memory_space<vmem>>, %arg10: memref<64x32xf32, #tpu.memory_space<vmem>>) attributes {dimension_semantics = [], scalar_prefetch = 0 : i64, scratch_operands = 1 : i64, tpu.core_type = #tpu.core_type<tc>} {
    %c0 = arith.constant 0 : index
    %c0_0 = arith.constant 0 : index
    %0 = vector.load %arg1[%c0, %c0_0] : memref<32x128xbf16, #tpu.memory_space<vmem>>, vector<32x128xbf16>
    %c0_1 = arith.constant 0 : index
    %c0_2 = arith.constant 0 : index
    %1 = vector.load %arg2[%c0_1, %c0_2] : memref<32x128xbf16, #tpu.memory_space<vmem>>, vector<32x128xbf16>
    %c0_3 = arith.constant 0 : index
    %c0_4 = arith.constant 0 : index
    %2 = vector.load %arg3[%c0_3, %c0_4] : memref<1x128xf32, #tpu.memory_space<vmem>>, vector<1x128xf32>
    %c0_5 = arith.constant 0 : index
    %c0_6 = arith.constant 0 : index
    %3 = vector.load %arg0[%c0_5, %c0_6] : memref<64x32xf32, #tpu.memory_space<vmem>>, vector<64x32xf32>
    %4 = arith.truncf %3 : vector<64x32xf32> to vector<64x32xbf16>
    %cst = arith.constant dense<0.000000e+00> : vector<64x128xf32>
    %5 = tpu.matmul %4, %0, %cst {dimension_numbers = #tpu.dot_dimension_numbers<[1], [0], [0], [1], [0, 0, 1, 1], [], []>} : vector<64x32xbf16>, vector<32x128xbf16>, vector<64x128xf32> -> vector<64x128xf32>
    %6 = vector.broadcast %2 : vector<1x128xf32> to vector<64x128xf32>
    %7 = arith.addf %5, %6 : vector<64x128xf32>
    %cst_7 = arith.constant 0.000000e+00 : f32
    %8 = vector.broadcast %cst_7 : f32 to vector<8x32xf32>
    %cst_8 = arith.constant 0.000000e+00 : f32
    %9 = vector.broadcast %cst_8 : f32 to vector<8x32xf32>
    %10 = vector.extract_strided_slice %7 {offsets = [0, 0], sizes = [8, 128], strides = [1, 1]} : vector<64x128xf32> to vector<8x128xf32>
    %11 = arith.truncf %8 : vector<8x32xf32> to vector<8x32xbf16>
    %cst_9 = arith.constant dense<0.000000e+00> : vector<8x128xf32>
    %12 = tpu.matmul %11, %1, %cst_9 {dimension_numbers = #tpu.dot_dimension_numbers<[1], [0], [0], [1], [0, 0, 1, 1], [], []>} : vector<8x32xbf16>, vector<32x128xbf16>, vector<8x128xf32> -> vector<8x128xf32>
    %13 = arith.addf %10, %12 : vector<8x128xf32>
    %14 = arith.negf %13 : vector<8x128xf32>
    %15 = math.exp %14 : vector<8x128xf32>
    %cst_10 = arith.constant 1.000000e+00 : f32
    %16 = vector.broadcast %cst_10 : f32 to vector<8x128xf32>
    %17 = arith.addf %16, %15 : vector<8x128xf32>
    %18 = arith.divf %16, %17 : vector<8x128xf32>
    %19 = math.tanh %13 : vector<8x128xf32>
    %20 = vector.extract_strided_slice %18 {offsets = [0, 0], sizes = [8, 32], strides = [1, 1]} : vector<8x128xf32> to vector<8x32xf32>
    %21 = vector.extract_strided_slice %18 {offsets = [0, 32], sizes = [8, 32], strides = [1, 1]} : vector<8x128xf32> to vector<8x32xf32>
    %22 = vector.extract_strided_slice %19 {offsets = [0, 64], sizes = [8, 32], strides = [1, 1]} : vector<8x128xf32> to vector<8x32xf32>
    %23 = vector.extract_strided_slice %18 {offsets = [0, 96], sizes = [8, 32], strides = [1, 1]} : vector<8x128xf32> to vector<8x32xf32>
    %24 = arith.mulf %21, %9 : vector<8x32xf32>
    %25 = arith.mulf %20, %22 : vector<8x32xf32>
    %26 = arith.addf %24, %25 : vector<8x32xf32>
    %27 = math.tanh %26 : vector<8x32xf32>
    %28 = arith.mulf %23, %27 : vector<8x32xf32>
    %c0_11 = arith.constant 0 : index
    %c0_12 = arith.constant 0 : index
    %29 = vector.load %arg10[%c0_11, %c0_12] : memref<64x32xf32, #tpu.memory_space<vmem>>, vector<8x32xf32>
    tpu.vector_store %arg10[%c0_11, %c0_12], %28 {strides = array<i32>} : memref<64x32xf32, #tpu.memory_space<vmem>>, vector<8x32xf32>,
    %30 = vector.extract_strided_slice %7 {offsets = [8, 0], sizes = [8, 128], strides = [1, 1]} : vector<64x128xf32> to vector<8x128xf32>
    %31 = arith.truncf %28 : vector<8x32xf32> to vector<8x32xbf16>
    %cst_13 = arith.constant dense<0.000000e+00> : vector<8x128xf32>
    %32 = tpu.matmul %31, %1, %cst_13 {dimension_numbers = #tpu.dot_dimension_numbers<[1], [0], [0], [1], [0, 0, 1, 1], [], []>} : vector<8x32xbf16>, vector<32x128xbf16>, vector<8x128xf32> -> vector<8x128xf32>
    %33 = arith.addf %30, %32 : vector<8x128xf32>
    %34 = arith.negf %33 : vector<8x128xf32>
    %35 = math.exp %34 : vector<8x128xf32>
    %cst_14 = arith.constant 1.000000e+00 : f32
    %36 = vector.broadcast %cst_14 : f32 to vector<8x128xf32>
    %37 = arith.addf %36, %35 : vector<8x128xf32>
    %38 = arith.divf %36, %37 : vector<8x128xf32>
    %39 = math.tanh %33 : vector<8x128xf32>
    %40 = vector.extract_strided_slice %38 {offsets = [0, 0], sizes = [8, 32], strides = [1, 1]} : vector<8x128xf32> to vector<8x32xf32>
    %41 = vector.extract_strided_slice %38 {offsets = [0, 32], sizes = [8, 32], strides = [1, 1]} : vector<8x128xf32> to vector<8x32xf32>
    %42 = vector.extract_strided_slice %39 {offsets = [0, 64], sizes = [8, 32], strides = [1, 1]} : vector<8x128xf32> to vector<8x32xf32>
    %43 = vector.extract_strided_slice %38 {offsets = [0, 96], sizes = [8, 32], strides = [1, 1]} : vector<8x128xf32> to vector<8x32xf32>
    %44 = arith.mulf %41, %26 : vector<8x32xf32>
    %45 = arith.mulf %40, %42 : vector<8x32xf32>
    %46 = arith.addf %44, %45 : vector<8x32xf32>
    %47 = math.tanh %46 : vector<8x32xf32>
    %48 = arith.mulf %43, %47 : vector<8x32xf32>
    %c8 = arith.constant 8 : index
    %c0_15 = arith.constant 0 : index
    %49 = vector.load %arg10[%c8, %c0_15] : memref<64x32xf32, #tpu.memory_space<vmem>>, vector<8x32xf32>
    tpu.vector_store %arg10[%c8, %c0_15], %48 {strides = array<i32>} : memref<64x32xf32, #tpu.memory_space<vmem>>, vector<8x32xf32>,
    %50 = vector.extract_strided_slice %7 {offsets = [16, 0], sizes = [8, 128], strides = [1, 1]} : vector<64x128xf32> to vector<8x128xf32>
    %51 = arith.truncf %48 : vector<8x32xf32> to vector<8x32xbf16>
    %cst_16 = arith.constant dense<0.000000e+00> : vector<8x128xf32>
    %52 = tpu.matmul %51, %1, %cst_16 {dimension_numbers = #tpu.dot_dimension_numbers<[1], [0], [0], [1], [0, 0, 1, 1], [], []>} : vector<8x32xbf16>, vector<32x128xbf16>, vector<8x128xf32> -> vector<8x128xf32>
    %53 = arith.addf %50, %52 : vector<8x128xf32>
    %54 = arith.negf %53 : vector<8x128xf32>
    %55 = math.exp %54 : vector<8x128xf32>
    %cst_17 = arith.constant 1.000000e+00 : f32
    %56 = vector.broadcast %cst_17 : f32 to vector<8x128xf32>
    %57 = arith.addf %56, %55 : vector<8x128xf32>
    %58 = arith.divf %56, %57 : vector<8x128xf32>
    %59 = math.tanh %53 : vector<8x128xf32>
    %60 = vector.extract_strided_slice %58 {offsets = [0, 0], sizes = [8, 32], strides = [1, 1]} : vector<8x128xf32> to vector<8x32xf32>
    %61 = vector.extract_strided_slice %58 {offsets = [0, 32], sizes = [8, 32], strides = [1, 1]} : vector<8x128xf32> to vector<8x32xf32>
    %62 = vector.extract_strided_slice %59 {offsets = [0, 64], sizes = [8, 32], strides = [1, 1]} : vector<8x128xf32> to vector<8x32xf32>
    %63 = vector.extract_strided_slice %58 {offsets = [0, 96], sizes = [8, 32], strides = [1, 1]} : vector<8x128xf32> to vector<8x32xf32>
    %64 = arith.mulf %61, %46 : vector<8x32xf32>
    %65 = arith.mulf %60, %62 : vector<8x32xf32>
    %66 = arith.addf %64, %65 : vector<8x32xf32>
    %67 = math.tanh %66 : vector<8x32xf32>
    %68 = arith.mulf %63, %67 : vector<8x32xf32>
    %c16 = arith.constant 16 : index
    %c0_18 = arith.constant 0 : index
    %69 = vector.load %arg10[%c16, %c0_18] : memref<64x32xf32, #tpu.memory_space<vmem>>, vector<8x32xf32>
    tpu.vector_store %arg10[%c16, %c0_18], %68 {strides = array<i32>} : memref<64x32xf32, #tpu.memory_space<vmem>>, vector<8x32xf32>,
    %70 = vector.extract_strided_slice %7 {offsets = [24, 0], sizes = [8, 128], strides = [1, 1]} : vector<64x128xf32> to vector<8x128xf32>
    %71 = arith.truncf %68 : vector<8x32xf32> to vector<8x32xbf16>
    %cst_19 = arith.constant dense<0.000000e+00> : vector<8x128xf32>
    %72 = tpu.matmul %71, %1, %cst_19 {dimension_numbers = #tpu.dot_dimension_numbers<[1], [0], [0], [1], [0, 0, 1, 1], [], []>} : vector<8x32xbf16>, vector<32x128xbf16>, vector<8x128xf32> -> vector<8x128xf32>
    %73 = arith.addf %70, %72 : vector<8x128xf32>
    %74 = arith.negf %73 : vector<8x128xf32>
    %75 = math.exp %74 : vector<8x128xf32>
    %cst_20 = arith.constant 1.000000e+00 : f32
    %76 = vector.broadcast %cst_20 : f32 to vector<8x128xf32>
    %77 = arith.addf %76, %75 : vector<8x128xf32>
    %78 = arith.divf %76, %77 : vector<8x128xf32>
    %79 = math.tanh %73 : vector<8x128xf32>
    %80 = vector.extract_strided_slice %78 {offsets = [0, 0], sizes = [8, 32], strides = [1, 1]} : vector<8x128xf32> to vector<8x32xf32>
    %81 = vector.extract_strided_slice %78 {offsets = [0, 32], sizes = [8, 32], strides = [1, 1]} : vector<8x128xf32> to vector<8x32xf32>
    %82 = vector.extract_strided_slice %79 {offsets = [0, 64], sizes = [8, 32], strides = [1, 1]} : vector<8x128xf32> to vector<8x32xf32>
    %83 = vector.extract_strided_slice %78 {offsets = [0, 96], sizes = [8, 32], strides = [1, 1]} : vector<8x128xf32> to vector<8x32xf32>
    %84 = arith.mulf %81, %66 : vector<8x32xf32>
    %85 = arith.mulf %80, %82 : vector<8x32xf32>
    %86 = arith.addf %84, %85 : vector<8x32xf32>
    %87 = math.tanh %86 : vector<8x32xf32>
    %88 = arith.mulf %83, %87 : vector<8x32xf32>
    %c24 = arith.constant 24 : index
    %c0_21 = arith.constant 0 : index
    %89 = vector.load %arg10[%c24, %c0_21] : memref<64x32xf32, #tpu.memory_space<vmem>>, vector<8x32xf32>
    tpu.vector_store %arg10[%c24, %c0_21], %88 {strides = array<i32>} : memref<64x32xf32, #tpu.memory_space<vmem>>, vector<8x32xf32>,
    %90 = vector.extract_strided_slice %7 {offsets = [32, 0], sizes = [8, 128], strides = [1, 1]} : vector<64x128xf32> to vector<8x128xf32>
    %91 = arith.truncf %88 : vector<8x32xf32> to vector<8x32xbf16>
    %cst_22 = arith.constant dense<0.000000e+00> : vector<8x128xf32>
    %92 = tpu.matmul %91, %1, %cst_22 {dimension_numbers = #tpu.dot_dimension_numbers<[1], [0], [0], [1], [0, 0, 1, 1], [], []>} : vector<8x32xbf16>, vector<32x128xbf16>, vector<8x128xf32> -> vector<8x128xf32>
    %93 = arith.addf %90, %92 : vector<8x128xf32>
    %94 = arith.negf %93 : vector<8x128xf32>
    %95 = math.exp %94 : vector<8x128xf32>
    %cst_23 = arith.constant 1.000000e+00 : f32
    %96 = vector.broadcast %cst_23 : f32 to vector<8x128xf32>
    %97 = arith.addf %96, %95 : vector<8x128xf32>
    %98 = arith.divf %96, %97 : vector<8x128xf32>
    %99 = math.tanh %93 : vector<8x128xf32>
    %100 = vector.extract_strided_slice %98 {offsets = [0, 0], sizes = [8, 32], strides = [1, 1]} : vector<8x128xf32> to vector<8x32xf32>
    %101 = vector.extract_strided_slice %98 {offsets = [0, 32], sizes = [8, 32], strides = [1, 1]} : vector<8x128xf32> to vector<8x32xf32>
    %102 = vector.extract_strided_slice %99 {offsets = [0, 64], sizes = [8, 32], strides = [1, 1]} : vector<8x128xf32> to vector<8x32xf32>
    %103 = vector.extract_strided_slice %98 {offsets = [0, 96], sizes = [8, 32], strides = [1, 1]} : vector<8x128xf32> to vector<8x32xf32>
    %104 = arith.mulf %101, %86 : vector<8x32xf32>
    %105 = arith.mulf %100, %102 : vector<8x32xf32>
    %106 = arith.addf %104, %105 : vector<8x32xf32>
    %107 = math.tanh %106 : vector<8x32xf32>
    %108 = arith.mulf %103, %107 : vector<8x32xf32>
    %c32 = arith.constant 32 : index
    %c0_24 = arith.constant 0 : index
    %109 = vector.load %arg10[%c32, %c0_24] : memref<64x32xf32, #tpu.memory_space<vmem>>, vector<8x32xf32>
    tpu.vector_store %arg10[%c32, %c0_24], %108 {strides = array<i32>} : memref<64x32xf32, #tpu.memory_space<vmem>>, vector<8x32xf32>,
    %110 = vector.extract_strided_slice %7 {offsets = [40, 0], sizes = [8, 128], strides = [1, 1]} : vector<64x128xf32> to vector<8x128xf32>
    %111 = arith.truncf %108 : vector<8x32xf32> to vector<8x32xbf16>
    %cst_25 = arith.constant dense<0.000000e+00> : vector<8x128xf32>
    %112 = tpu.matmul %111, %1, %cst_25 {dimension_numbers = #tpu.dot_dimension_numbers<[1], [0], [0], [1], [0, 0, 1, 1], [], []>} : vector<8x32xbf16>, vector<32x128xbf16>, vector<8x128xf32> -> vector<8x128xf32>
    %113 = arith.addf %110, %112 : vector<8x128xf32>
    %114 = arith.negf %113 : vector<8x128xf32>
    %115 = math.exp %114 : vector<8x128xf32>
    %cst_26 = arith.constant 1.000000e+00 : f32
    %116 = vector.broadcast %cst_26 : f32 to vector<8x128xf32>
    %117 = arith.addf %116, %115 : vector<8x128xf32>
    %118 = arith.divf %116, %117 : vector<8x128xf32>
    %119 = math.tanh %113 : vector<8x128xf32>
    %120 = vector.extract_strided_slice %118 {offsets = [0, 0], sizes = [8, 32], strides = [1, 1]} : vector<8x128xf32> to vector<8x32xf32>
    %121 = vector.extract_strided_slice %118 {offsets = [0, 32], sizes = [8, 32], strides = [1, 1]} : vector<8x128xf32> to vector<8x32xf32>
    %122 = vector.extract_strided_slice %119 {offsets = [0, 64], sizes = [8, 32], strides = [1, 1]} : vector<8x128xf32> to vector<8x32xf32>
    %123 = vector.extract_strided_slice %118 {offsets = [0, 96], sizes = [8, 32], strides = [1, 1]} : vector<8x128xf32> to vector<8x32xf32>
    %124 = arith.mulf %121, %106 : vector<8x32xf32>
    %125 = arith.mulf %120, %122 : vector<8x32xf32>
    %126 = arith.addf %124, %125 : vector<8x32xf32>
    %127 = math.tanh %126 : vector<8x32xf32>
    %128 = arith.mulf %123, %127 : vector<8x32xf32>
    %c40 = arith.constant 40 : index
    %c0_27 = arith.constant 0 : index
    %129 = vector.load %arg10[%c40, %c0_27] : memref<64x32xf32, #tpu.memory_space<vmem>>, vector<8x32xf32>
    tpu.vector_store %arg10[%c40, %c0_27], %128 {strides = array<i32>} : memref<64x32xf32, #tpu.memory_space<vmem>>, vector<8x32xf32>,
    %130 = vector.extract_strided_slice %7 {offsets = [48, 0], sizes = [8, 128], strides = [1, 1]} : vector<64x128xf32> to vector<8x128xf32>
    %131 = arith.truncf %128 : vector<8x32xf32> to vector<8x32xbf16>
    %cst_28 = arith.constant dense<0.000000e+00> : vector<8x128xf32>
    %132 = tpu.matmul %131, %1, %cst_28 {dimension_numbers = #tpu.dot_dimension_numbers<[1], [0], [0], [1], [0, 0, 1, 1], [], []>} : vector<8x32xbf16>, vector<32x128xbf16>, vector<8x128xf32> -> vector<8x128xf32>
    %133 = arith.addf %130, %132 : vector<8x128xf32>
    %134 = arith.negf %133 : vector<8x128xf32>
    %135 = math.exp %134 : vector<8x128xf32>
    %cst_29 = arith.constant 1.000000e+00 : f32
    %136 = vector.broadcast %cst_29 : f32 to vector<8x128xf32>
    %137 = arith.addf %136, %135 : vector<8x128xf32>
    %138 = arith.divf %136, %137 : vector<8x128xf32>
    %139 = math.tanh %133 : vector<8x128xf32>
    %140 = vector.extract_strided_slice %138 {offsets = [0, 0], sizes = [8, 32], strides = [1, 1]} : vector<8x128xf32> to vector<8x32xf32>
    %141 = vector.extract_strided_slice %138 {offsets = [0, 32], sizes = [8, 32], strides = [1, 1]} : vector<8x128xf32> to vector<8x32xf32>
    %142 = vector.extract_strided_slice %139 {offsets = [0, 64], sizes = [8, 32], strides = [1, 1]} : vector<8x128xf32> to vector<8x32xf32>
    %143 = vector.extract_strided_slice %138 {offsets = [0, 96], sizes = [8, 32], strides = [1, 1]} : vector<8x128xf32> to vector<8x32xf32>
    %144 = arith.mulf %141, %126 : vector<8x32xf32>
    %145 = arith.mulf %140, %142 : vector<8x32xf32>
    %146 = arith.addf %144, %145 : vector<8x32xf32>
    %147 = math.tanh %146 : vector<8x32xf32>
    %148 = arith.mulf %143, %147 : vector<8x32xf32>
    %c48 = arith.constant 48 : index
    %c0_30 = arith.constant 0 : index
    %149 = vector.load %arg10[%c48, %c0_30] : memref<64x32xf32, #tpu.memory_space<vmem>>, vector<8x32xf32>
    tpu.vector_store %arg10[%c48, %c0_30], %148 {strides = array<i32>} : memref<64x32xf32, #tpu.memory_space<vmem>>, vector<8x32xf32>,
    %150 = vector.extract_strided_slice %7 {offsets = [56, 0], sizes = [8, 128], strides = [1, 1]} : vector<64x128xf32> to vector<8x128xf32>
    %151 = arith.truncf %148 : vector<8x32xf32> to vector<8x32xbf16>
    %cst_31 = arith.constant dense<0.000000e+00> : vector<8x128xf32>
    %152 = tpu.matmul %151, %1, %cst_31 {dimension_numbers = #tpu.dot_dimension_numbers<[1], [0], [0], [1], [0, 0, 1, 1], [], []>} : vector<8x32xbf16>, vector<32x128xbf16>, vector<8x128xf32> -> vector<8x128xf32>
    %153 = arith.addf %150, %152 : vector<8x128xf32>
    %154 = arith.negf %153 : vector<8x128xf32>
    %155 = math.exp %154 : vector<8x128xf32>
    %cst_32 = arith.constant 1.000000e+00 : f32
    %156 = vector.broadcast %cst_32 : f32 to vector<8x128xf32>
    %157 = arith.addf %156, %155 : vector<8x128xf32>
    %158 = arith.divf %156, %157 : vector<8x128xf32>
    %159 = math.tanh %153 : vector<8x128xf32>
    %160 = vector.extract_strided_slice %158 {offsets = [0, 0], sizes = [8, 32], strides = [1, 1]} : vector<8x128xf32> to vector<8x32xf32>
    %161 = vector.extract_strided_slice %158 {offsets = [0, 32], sizes = [8, 32], strides = [1, 1]} : vector<8x128xf32> to vector<8x32xf32>
    %162 = vector.extract_strided_slice %159 {offsets = [0, 64], sizes = [8, 32], strides = [1, 1]} : vector<8x128xf32> to vector<8x32xf32>
    %163 = vector.extract_strided_slice %158 {offsets = [0, 96], sizes = [8, 32], strides = [1, 1]} : vector<8x128xf32> to vector<8x32xf32>
    %164 = arith.mulf %161, %146 : vector<8x32xf32>
    %165 = arith.mulf %160, %162 : vector<8x32xf32>
    %166 = arith.addf %164, %165 : vector<8x32xf32>
    %167 = math.tanh %166 : vector<8x32xf32>
    %168 = arith.mulf %163, %167 : vector<8x32xf32>
    %c56 = arith.constant 56 : index
    %c0_33 = arith.constant 0 : index
    %169 = vector.load %arg10[%c56, %c0_33] : memref<64x32xf32, #tpu.memory_space<vmem>>, vector<8x32xf32>
    tpu.vector_store %arg10[%c56, %c0_33], %168 {strides = array<i32>} : memref<64x32xf32, #tpu.memory_space<vmem>>, vector<8x32xf32>,
    %c0_34 = arith.constant 0 : index
    %c0_35 = arith.constant 0 : index
    %170 = vector.load %arg4[%c0_34, %c0_35] : memref<32x128xbf16, #tpu.memory_space<vmem>>, vector<32x128xbf16>
    %c0_36 = arith.constant 0 : index
    %c0_37 = arith.constant 0 : index
    %171 = vector.load %arg5[%c0_36, %c0_37] : memref<32x128xbf16, #tpu.memory_space<vmem>>, vector<32x128xbf16>
    %c0_38 = arith.constant 0 : index
    %c0_39 = arith.constant 0 : index
    %172 = vector.load %arg6[%c0_38, %c0_39] : memref<1x128xf32, #tpu.memory_space<vmem>>, vector<1x128xf32>
    %c0_40 = arith.constant 0 : index
    %c0_41 = arith.constant 0 : index
    %173 = vector.load %arg10[%c0_40, %c0_41] : memref<64x32xf32, #tpu.memory_space<vmem>>, vector<64x32xf32>
    %174 = arith.truncf %173 : vector<64x32xf32> to vector<64x32xbf16>
    %cst_42 = arith.constant dense<0.000000e+00> : vector<64x128xf32>
    %175 = tpu.matmul %174, %170, %cst_42 {dimension_numbers = #tpu.dot_dimension_numbers<[1], [0], [0], [1], [0, 0, 1, 1], [], []>} : vector<64x32xbf16>, vector<32x128xbf16>, vector<64x128xf32> -> vector<64x128xf32>
    %176 = vector.broadcast %172 : vector<1x128xf32> to vector<64x128xf32>
    %177 = arith.addf %175, %176 : vector<64x128xf32>
    %cst_43 = arith.constant 0.000000e+00 : f32
    %178 = vector.broadcast %cst_43 : f32 to vector<8x32xf32>
    %cst_44 = arith.constant 0.000000e+00 : f32
    %179 = vector.broadcast %cst_44 : f32 to vector<8x32xf32>
    %180 = vector.extract_strided_slice %177 {offsets = [0, 0], sizes = [8, 128], strides = [1, 1]} : vector<64x128xf32> to vector<8x128xf32>
    %181 = arith.truncf %178 : vector<8x32xf32> to vector<8x32xbf16>
    %cst_45 = arith.constant dense<0.000000e+00> : vector<8x128xf32>
    %182 = tpu.matmul %181, %171, %cst_45 {dimension_numbers = #tpu.dot_dimension_numbers<[1], [0], [0], [1], [0, 0, 1, 1], [], []>} : vector<8x32xbf16>, vector<32x128xbf16>, vector<8x128xf32> -> vector<8x128xf32>
    %183 = arith.addf %180, %182 : vector<8x128xf32>
    %184 = arith.negf %183 : vector<8x128xf32>
    %185 = math.exp %184 : vector<8x128xf32>
    %cst_46 = arith.constant 1.000000e+00 : f32
    %186 = vector.broadcast %cst_46 : f32 to vector<8x128xf32>
    %187 = arith.addf %186, %185 : vector<8x128xf32>
    %188 = arith.divf %186, %187 : vector<8x128xf32>
    %189 = math.tanh %183 : vector<8x128xf32>
    %190 = vector.extract_strided_slice %188 {offsets = [0, 0], sizes = [8, 32], strides = [1, 1]} : vector<8x128xf32> to vector<8x32xf32>
    %191 = vector.extract_strided_slice %188 {offsets = [0, 32], sizes = [8, 32], strides = [1, 1]} : vector<8x128xf32> to vector<8x32xf32>
    %192 = vector.extract_strided_slice %189 {offsets = [0, 64], sizes = [8, 32], strides = [1, 1]} : vector<8x128xf32> to vector<8x32xf32>
    %193 = vector.extract_strided_slice %188 {offsets = [0, 96], sizes = [8, 32], strides = [1, 1]} : vector<8x128xf32> to vector<8x32xf32>
    %194 = arith.mulf %191, %179 : vector<8x32xf32>
    %195 = arith.mulf %190, %192 : vector<8x32xf32>
    %196 = arith.addf %194, %195 : vector<8x32xf32>
    %197 = math.tanh %196 : vector<8x32xf32>
    %198 = arith.mulf %193, %197 : vector<8x32xf32>
    %199 = vector.extract_strided_slice %177 {offsets = [8, 0], sizes = [8, 128], strides = [1, 1]} : vector<64x128xf32> to vector<8x128xf32>
    %200 = arith.truncf %198 : vector<8x32xf32> to vector<8x32xbf16>
    %cst_47 = arith.constant dense<0.000000e+00> : vector<8x128xf32>
    %201 = tpu.matmul %200, %171, %cst_47 {dimension_numbers = #tpu.dot_dimension_numbers<[1], [0], [0], [1], [0, 0, 1, 1], [], []>} : vector<8x32xbf16>, vector<32x128xbf16>, vector<8x128xf32> -> vector<8x128xf32>
    %202 = arith.addf %199, %201 : vector<8x128xf32>
    %203 = arith.negf %202 : vector<8x128xf32>
    %204 = math.exp %203 : vector<8x128xf32>
    %cst_48 = arith.constant 1.000000e+00 : f32
    %205 = vector.broadcast %cst_48 : f32 to vector<8x128xf32>
    %206 = arith.addf %205, %204 : vector<8x128xf32>
    %207 = arith.divf %205, %206 : vector<8x128xf32>
    %208 = math.tanh %202 : vector<8x128xf32>
    %209 = vector.extract_strided_slice %207 {offsets = [0, 0], sizes = [8, 32], strides = [1, 1]} : vector<8x128xf32> to vector<8x32xf32>
    %210 = vector.extract_strided_slice %207 {offsets = [0, 32], sizes = [8, 32], strides = [1, 1]} : vector<8x128xf32> to vector<8x32xf32>
    %211 = vector.extract_strided_slice %208 {offsets = [0, 64], sizes = [8, 32], strides = [1, 1]} : vector<8x128xf32> to vector<8x32xf32>
    %212 = vector.extract_strided_slice %207 {offsets = [0, 96], sizes = [8, 32], strides = [1, 1]} : vector<8x128xf32> to vector<8x32xf32>
    %213 = arith.mulf %210, %196 : vector<8x32xf32>
    %214 = arith.mulf %209, %211 : vector<8x32xf32>
    %215 = arith.addf %213, %214 : vector<8x32xf32>
    %216 = math.tanh %215 : vector<8x32xf32>
    %217 = arith.mulf %212, %216 : vector<8x32xf32>
    %218 = vector.extract_strided_slice %177 {offsets = [16, 0], sizes = [8, 128], strides = [1, 1]} : vector<64x128xf32> to vector<8x128xf32>
    %219 = arith.truncf %217 : vector<8x32xf32> to vector<8x32xbf16>
    %cst_49 = arith.constant dense<0.000000e+00> : vector<8x128xf32>
    %220 = tpu.matmul %219, %171, %cst_49 {dimension_numbers = #tpu.dot_dimension_numbers<[1], [0], [0], [1], [0, 0, 1, 1], [], []>} : vector<8x32xbf16>, vector<32x128xbf16>, vector<8x128xf32> -> vector<8x128xf32>
    %221 = arith.addf %218, %220 : vector<8x128xf32>
    %222 = arith.negf %221 : vector<8x128xf32>
    %223 = math.exp %222 : vector<8x128xf32>
    %cst_50 = arith.constant 1.000000e+00 : f32
    %224 = vector.broadcast %cst_50 : f32 to vector<8x128xf32>
    %225 = arith.addf %224, %223 : vector<8x128xf32>
    %226 = arith.divf %224, %225 : vector<8x128xf32>
    %227 = math.tanh %221 : vector<8x128xf32>
    %228 = vector.extract_strided_slice %226 {offsets = [0, 0], sizes = [8, 32], strides = [1, 1]} : vector<8x128xf32> to vector<8x32xf32>
    %229 = vector.extract_strided_slice %226 {offsets = [0, 32], sizes = [8, 32], strides = [1, 1]} : vector<8x128xf32> to vector<8x32xf32>
    %230 = vector.extract_strided_slice %227 {offsets = [0, 64], sizes = [8, 32], strides = [1, 1]} : vector<8x128xf32> to vector<8x32xf32>
    %231 = vector.extract_strided_slice %226 {offsets = [0, 96], sizes = [8, 32], strides = [1, 1]} : vector<8x128xf32> to vector<8x32xf32>
    %232 = arith.mulf %229, %215 : vector<8x32xf32>
    %233 = arith.mulf %228, %230 : vector<8x32xf32>
    %234 = arith.addf %232, %233 : vector<8x32xf32>
    %235 = math.tanh %234 : vector<8x32xf32>
    %236 = arith.mulf %231, %235 : vector<8x32xf32>
    %237 = vector.extract_strided_slice %177 {offsets = [24, 0], sizes = [8, 128], strides = [1, 1]} : vector<64x128xf32> to vector<8x128xf32>
    %238 = arith.truncf %236 : vector<8x32xf32> to vector<8x32xbf16>
    %cst_51 = arith.constant dense<0.000000e+00> : vector<8x128xf32>
    %239 = tpu.matmul %238, %171, %cst_51 {dimension_numbers = #tpu.dot_dimension_numbers<[1], [0], [0], [1], [0, 0, 1, 1], [], []>} : vector<8x32xbf16>, vector<32x128xbf16>, vector<8x128xf32> -> vector<8x128xf32>
    %240 = arith.addf %237, %239 : vector<8x128xf32>
    %241 = arith.negf %240 : vector<8x128xf32>
    %242 = math.exp %241 : vector<8x128xf32>
    %cst_52 = arith.constant 1.000000e+00 : f32
    %243 = vector.broadcast %cst_52 : f32 to vector<8x128xf32>
    %244 = arith.addf %243, %242 : vector<8x128xf32>
    %245 = arith.divf %243, %244 : vector<8x128xf32>
    %246 = math.tanh %240 : vector<8x128xf32>
    %247 = vector.extract_strided_slice %245 {offsets = [0, 0], sizes = [8, 32], strides = [1, 1]} : vector<8x128xf32> to vector<8x32xf32>
    %248 = vector.extract_strided_slice %245 {offsets = [0, 32], sizes = [8, 32], strides = [1, 1]} : vector<8x128xf32> to vector<8x32xf32>
    %249 = vector.extract_strided_slice %246 {offsets = [0, 64], sizes = [8, 32], strides = [1, 1]} : vector<8x128xf32> to vector<8x32xf32>
    %250 = vector.extract_strided_slice %245 {offsets = [0, 96], sizes = [8, 32], strides = [1, 1]} : vector<8x128xf32> to vector<8x32xf32>
    %251 = arith.mulf %248, %234 : vector<8x32xf32>
    %252 = arith.mulf %247, %249 : vector<8x32xf32>
    %253 = arith.addf %251, %252 : vector<8x32xf32>
    %254 = math.tanh %253 : vector<8x32xf32>
    %255 = arith.mulf %250, %254 : vector<8x32xf32>
    %256 = vector.extract_strided_slice %177 {offsets = [32, 0], sizes = [8, 128], strides = [1, 1]} : vector<64x128xf32> to vector<8x128xf32>
    %257 = arith.truncf %255 : vector<8x32xf32> to vector<8x32xbf16>
    %cst_53 = arith.constant dense<0.000000e+00> : vector<8x128xf32>
    %258 = tpu.matmul %257, %171, %cst_53 {dimension_numbers = #tpu.dot_dimension_numbers<[1], [0], [0], [1], [0, 0, 1, 1], [], []>} : vector<8x32xbf16>, vector<32x128xbf16>, vector<8x128xf32> -> vector<8x128xf32>
    %259 = arith.addf %256, %258 : vector<8x128xf32>
    %260 = arith.negf %259 : vector<8x128xf32>
    %261 = math.exp %260 : vector<8x128xf32>
    %cst_54 = arith.constant 1.000000e+00 : f32
    %262 = vector.broadcast %cst_54 : f32 to vector<8x128xf32>
    %263 = arith.addf %262, %261 : vector<8x128xf32>
    %264 = arith.divf %262, %263 : vector<8x128xf32>
    %265 = math.tanh %259 : vector<8x128xf32>
    %266 = vector.extract_strided_slice %264 {offsets = [0, 0], sizes = [8, 32], strides = [1, 1]} : vector<8x128xf32> to vector<8x32xf32>
    %267 = vector.extract_strided_slice %264 {offsets = [0, 32], sizes = [8, 32], strides = [1, 1]} : vector<8x128xf32> to vector<8x32xf32>
    %268 = vector.extract_strided_slice %265 {offsets = [0, 64], sizes = [8, 32], strides = [1, 1]} : vector<8x128xf32> to vector<8x32xf32>
    %269 = vector.extract_strided_slice %264 {offsets = [0, 96], sizes = [8, 32], strides = [1, 1]} : vector<8x128xf32> to vector<8x32xf32>
    %270 = arith.mulf %267, %253 : vector<8x32xf32>
    %271 = arith.mulf %266, %268 : vector<8x32xf32>
    %272 = arith.addf %270, %271 : vector<8x32xf32>
    %273 = math.tanh %272 : vector<8x32xf32>
    %274 = arith.mulf %269, %273 : vector<8x32xf32>
    %275 = vector.extract_strided_slice %177 {offsets = [40, 0], sizes = [8, 128], strides = [1, 1]} : vector<64x128xf32> to vector<8x128xf32>
    %276 = arith.truncf %274 : vector<8x32xf32> to vector<8x32xbf16>
    %cst_55 = arith.constant dense<0.000000e+00> : vector<8x128xf32>
    %277 = tpu.matmul %276, %171, %cst_55 {dimension_numbers = #tpu.dot_dimension_numbers<[1], [0], [0], [1], [0, 0, 1, 1], [], []>} : vector<8x32xbf16>, vector<32x128xbf16>, vector<8x128xf32> -> vector<8x128xf32>
    %278 = arith.addf %275, %277 : vector<8x128xf32>
    %279 = arith.negf %278 : vector<8x128xf32>
    %280 = math.exp %279 : vector<8x128xf32>
    %cst_56 = arith.constant 1.000000e+00 : f32
    %281 = vector.broadcast %cst_56 : f32 to vector<8x128xf32>
    %282 = arith.addf %281, %280 : vector<8x128xf32>
    %283 = arith.divf %281, %282 : vector<8x128xf32>
    %284 = math.tanh %278 : vector<8x128xf32>
    %285 = vector.extract_strided_slice %283 {offsets = [0, 0], sizes = [8, 32], strides = [1, 1]} : vector<8x128xf32> to vector<8x32xf32>
    %286 = vector.extract_strided_slice %283 {offsets = [0, 32], sizes = [8, 32], strides = [1, 1]} : vector<8x128xf32> to vector<8x32xf32>
    %287 = vector.extract_strided_slice %284 {offsets = [0, 64], sizes = [8, 32], strides = [1, 1]} : vector<8x128xf32> to vector<8x32xf32>
    %288 = vector.extract_strided_slice %283 {offsets = [0, 96], sizes = [8, 32], strides = [1, 1]} : vector<8x128xf32> to vector<8x32xf32>
    %289 = arith.mulf %286, %272 : vector<8x32xf32>
    %290 = arith.mulf %285, %287 : vector<8x32xf32>
    %291 = arith.addf %289, %290 : vector<8x32xf32>
    %292 = math.tanh %291 : vector<8x32xf32>
    %293 = arith.mulf %288, %292 : vector<8x32xf32>
    %294 = vector.extract_strided_slice %177 {offsets = [48, 0], sizes = [8, 128], strides = [1, 1]} : vector<64x128xf32> to vector<8x128xf32>
    %295 = arith.truncf %293 : vector<8x32xf32> to vector<8x32xbf16>
    %cst_57 = arith.constant dense<0.000000e+00> : vector<8x128xf32>
    %296 = tpu.matmul %295, %171, %cst_57 {dimension_numbers = #tpu.dot_dimension_numbers<[1], [0], [0], [1], [0, 0, 1, 1], [], []>} : vector<8x32xbf16>, vector<32x128xbf16>, vector<8x128xf32> -> vector<8x128xf32>
    %297 = arith.addf %294, %296 : vector<8x128xf32>
    %298 = arith.negf %297 : vector<8x128xf32>
    %299 = math.exp %298 : vector<8x128xf32>
    %cst_58 = arith.constant 1.000000e+00 : f32
    %300 = vector.broadcast %cst_58 : f32 to vector<8x128xf32>
    %301 = arith.addf %300, %299 : vector<8x128xf32>
    %302 = arith.divf %300, %301 : vector<8x128xf32>
    %303 = math.tanh %297 : vector<8x128xf32>
    %304 = vector.extract_strided_slice %302 {offsets = [0, 0], sizes = [8, 32], strides = [1, 1]} : vector<8x128xf32> to vector<8x32xf32>
    %305 = vector.extract_strided_slice %302 {offsets = [0, 32], sizes = [8, 32], strides = [1, 1]} : vector<8x128xf32> to vector<8x32xf32>
    %306 = vector.extract_strided_slice %303 {offsets = [0, 64], sizes = [8, 32], strides = [1, 1]} : vector<8x128xf32> to vector<8x32xf32>
    %307 = vector.extract_strided_slice %302 {offsets = [0, 96], sizes = [8, 32], strides = [1, 1]} : vector<8x128xf32> to vector<8x32xf32>
    %308 = arith.mulf %305, %291 : vector<8x32xf32>
    %309 = arith.mulf %304, %306 : vector<8x32xf32>
    %310 = arith.addf %308, %309 : vector<8x32xf32>
    %311 = math.tanh %310 : vector<8x32xf32>
    %312 = arith.mulf %307, %311 : vector<8x32xf32>
    %313 = vector.extract_strided_slice %177 {offsets = [56, 0], sizes = [8, 128], strides = [1, 1]} : vector<64x128xf32> to vector<8x128xf32>
    %314 = arith.truncf %312 : vector<8x32xf32> to vector<8x32xbf16>
    %cst_59 = arith.constant dense<0.000000e+00> : vector<8x128xf32>
    %315 = tpu.matmul %314, %171, %cst_59 {dimension_numbers = #tpu.dot_dimension_numbers<[1], [0], [0], [1], [0, 0, 1, 1], [], []>} : vector<8x32xbf16>, vector<32x128xbf16>, vector<8x128xf32> -> vector<8x128xf32>
    %316 = arith.addf %313, %315 : vector<8x128xf32>
    %317 = arith.negf %316 : vector<8x128xf32>
    %318 = math.exp %317 : vector<8x128xf32>
    %cst_60 = arith.constant 1.000000e+00 : f32
    %319 = vector.broadcast %cst_60 : f32 to vector<8x128xf32>
    %320 = arith.addf %319, %318 : vector<8x128xf32>
    %321 = arith.divf %319, %320 : vector<8x128xf32>
    %322 = math.tanh %316 : vector<8x128xf32>
    %323 = vector.extract_strided_slice %321 {offsets = [0, 0], sizes = [8, 32], strides = [1, 1]} : vector<8x128xf32> to vector<8x32xf32>
    %324 = vector.extract_strided_slice %321 {offsets = [0, 32], sizes = [8, 32], strides = [1, 1]} : vector<8x128xf32> to vector<8x32xf32>
    %325 = vector.extract_strided_slice %322 {offsets = [0, 64], sizes = [8, 32], strides = [1, 1]} : vector<8x128xf32> to vector<8x32xf32>
    %326 = vector.extract_strided_slice %321 {offsets = [0, 96], sizes = [8, 32], strides = [1, 1]} : vector<8x128xf32> to vector<8x32xf32>
    %327 = arith.mulf %324, %310 : vector<8x32xf32>
    %328 = arith.mulf %323, %325 : vector<8x32xf32>
    %329 = arith.addf %327, %328 : vector<8x32xf32>
    %330 = math.tanh %329 : vector<8x32xf32>
    %331 = arith.mulf %326, %330 : vector<8x32xf32>
    %332 = arith.truncf %331 : vector<8x32xf32> to vector<8x32xbf16>
    %c0_61 = arith.constant 0 : index
    %c0_62 = arith.constant 0 : index
    %333 = vector.load %arg7[%c0_61, %c0_62] : memref<32x128xbf16, #tpu.memory_space<vmem>>, vector<32x128xbf16>
    %cst_63 = arith.constant dense<0.000000e+00> : vector<8x128xf32>
    %334 = tpu.matmul %332, %333, %cst_63 {dimension_numbers = #tpu.dot_dimension_numbers<[1], [0], [0], [1], [0, 0, 1, 1], [], []>} : vector<8x32xbf16>, vector<32x128xbf16>, vector<8x128xf32> -> vector<8x128xf32>
    %c0_64 = arith.constant 0 : index
    %c0_65 = arith.constant 0 : index
    %335 = vector.load %arg8[%c0_64, %c0_65] : memref<1x128xf32, #tpu.memory_space<vmem>>, vector<1x128xf32>
    %336 = vector.broadcast %335 : vector<1x128xf32> to vector<8x128xf32>
    %337 = arith.addf %334, %336 : vector<8x128xf32>
    %c0_66 = arith.constant 0 : index
    %c0_67 = arith.constant 0 : index
    %338 = vector.load %arg9[%c0_66, %c0_67] : memref<8x128xf32, #tpu.memory_space<vmem>>, vector<8x128xf32>
    tpu.vector_store %arg9[%c0_66, %c0_67], %337 {strides = array<i32>} : memref<8x128xf32, #tpu.memory_space<vmem>>, vector<8x128xf32>,
    return
  }
}

</mosaic_0001>

<llo_original>
// kernel: recunet_forward.1
$region0: #{recunet_forward.1}
  #allocation0 [shape = 'u32[]', space=smem, size = 0x4, offset = 0x4, fixed_abs, tag = 'smem constant byte address 0x4 - core index']
  #allocation1 [shape = 'u32[144,128]{1,0:T(1,128)}', space=vmem, size = 0x12000, scoped, tag = 'internal scratch']
  #allocation2 [shape = 'f32[64,32]{1,0:T(8,128)}', space=vmem, size = 0x8000, scoped, tag = 'scratch operand']
  %s0 = inlined_call_operand.vmem [shape: f32[64,32], index: 0, kind: input, shape index: {}]
  %s1 = inlined_call_operand.vmem [shape: bf16[32,128], index: 1, kind: input, shape index: {}]
  %s2 = inlined_call_operand.vmem [shape: bf16[32,128], index: 2, kind: input, shape index: {}]
  %s3 = inlined_call_operand.vmem [shape: f32[1,128], index: 3, kind: input, shape index: {}]
  %s4 = inlined_call_operand.vmem [shape: bf16[32,128], index: 4, kind: input, shape index: {}]
  %s5 = inlined_call_operand.vmem [shape: bf16[32,128], index: 5, kind: input, shape index: {}]
  %s6 = inlined_call_operand.vmem [shape: f32[1,128], index: 6, kind: input, shape index: {}]
  %s7 = inlined_call_operand.vmem [shape: bf16[32,128], index: 7, kind: input, shape index: {}]
  %s8 = inlined_call_operand.vmem [shape: f32[1,128], index: 8, kind: input, shape index: {}]
  %s9 = inlined_call_operand.hbm [shape: f32[8,128], index: 9, kind: output, shape index: {}]
  %s10 = sld [smem:[#allocation0]]
  $region46: #{recunet_forward.1} parent=0
    _
  %s12 = ssub.s32 1, %s10
  %s13 = scalar_select 0, %s12, %s10
  $region1: #{recunet_forward.1} parent=0
    #allocation3 [shape = 'u8[4096]{0}', space=vmem, size = 0x1000, scoped, tag = 'output window, operand 0, single buffered']
    #allocation4 [shape = 's32[1]{0}', space=sflag, size = 0x4, scoped, tag = 'scoped memory for recunet_forward.1']
    %14 = vsyncpa [#allocation4], 0
    // Predicated region
    $region2: #{recunet_forward.1} parent=1 // pred_check
      _
    $region3: #{recunet_forward.1} parent=1 // pred_check_branch
      %16 = sbr.rel (0) target = $region5
    $region4: #{recunet_forward.1} parent=1 // pred_region
      _
    $region5: #{recunet_forward.1} parent=1 // pred_fallthru
      _
    // Predicated region
    $region6: #{recunet_forward.1} parent=1 // pred_check
      _
    $region7: #{recunet_forward.1} parent=1 // pred_check_branch
      %18 = sbr.rel (0) target = $region9
    $region8: #{recunet_forward.1} parent=1 // pred_region
      _
    $region9: #{recunet_forward.1} parent=1 // pred_fallthru
      _
    // Predicated region
    $region10: #{recunet_forward.1} parent=1 // pred_check
      _
    $region11: #{recunet_forward.1} parent=1 // pred_check_branch
      %20 = sbr.rel (0) target = $region13
    $region12: #{recunet_forward.1} parent=1 // pred_region
      _
    $region13: #{recunet_forward.1} parent=1 // pred_fallthru
      _
    // Predicated region
    $region14: #{recunet_forward.1} parent=1 // pred_check
      _
    $region15: #{recunet_forward.1} parent=1 // pred_check_branch
      %22 = sbr.rel (0) target = $region17
    $region16: #{recunet_forward.1} parent=1 // pred_region
      _
    $region17: #{recunet_forward.1} parent=1 // pred_fallthru
      _
    // Predicated region
    $region18: #{recunet_forward.1} parent=1 // pred_check
      _
    $region19: #{recunet_forward.1} parent=1 // pred_check_branch
      %24 = sbr.rel (0) target = $region21
    $region20: #{recunet_forward.1} parent=1 // pred_region
      _
    $region21: #{recunet_forward.1} parent=1 // pred_fallthru
      _
    // Predicated region
    $region22: #{recunet_forward.1} parent=1 // pred_check
      _
    $region23: #{recunet_forward.1} parent=1 // pred_check_branch
      %26 = sbr.rel (0) target = $region25
    $region24: #{recunet_forward.1} parent=1 // pred_region
      _
    $region25: #{recunet_forward.1} parent=1 // pred_fallthru
      _
    // Predicated region
    $region26: #{recunet_forward.1} parent=1 // pred_check
      _
    $region27: #{recunet_forward.1} parent=1 // pred_check_branch
      %28 = sbr.rel (0) target = $region29
    $region28: #{recunet_forward.1} parent=1 // pred_region
      _
    $region29: #{recunet_forward.1} parent=1 // pred_fallthru
      _
    // Predicated region
    $region30: #{recunet_forward.1} parent=1 // pred_check
      _
    $region31: #{recunet_forward.1} parent=1 // pred_check_branch
      %30 = sbr.rel (0) target = $region33
    $region32: #{recunet_forward.1} parent=1 // pred_region
      _
    $region33: #{recunet_forward.1} parent=1 // pred_fallthru
      _
    // Predicated region
    $region34: #{recunet_forward.1} parent=1 // pred_check
      _
    $region35: #{recunet_forward.1} parent=1 // pred_check_branch
      %32 = sbr.rel (0) target = $region37
    $region36: #{recunet_forward.1} parent=1 // pred_region
      _
    $region37: #{recunet_forward.1} parent=1 // pred_fallthru
      _
    %v34 = vld [vmem:[%s1] sm:$0xf]
    %v35 = vld [vmem:[%s1 + $0x4] sm:$0xf]
    %v36 = vld [vmem:[%s1 + $0x8] sm:$0xf]
    %v37 = vld [vmem:[%s1 + $0xc] sm:$0xf]
    %v38 = vld [vmem:[%s2] sm:$0xf]
    %v39 = vld [vmem:[%s2 + $0x4] sm:$0xf]
    %v40 = vld [vmem:[%s2 + $0x8] sm:$0xf]
    %v41 = vld [vmem:[%s2 + $0xc] sm:$0xf]
    %v42 = vld [vmem:[%s3] sm:$0x1]
    %v43 = vld [vmem:[%s0] sm:$0xff]
    %v44 = vld [vmem:[%s0 + $0x8] sm:$0xff]
    %v45 = vld [vmem:[%s0 + $0x10] sm:$0xff]
    %v46 = vld [vmem:[%s0 + $0x18] sm:$0xff]
    %v47 = vld [vmem:[%s0 + $0x20] sm:$0xff]
    %v48 = vld [vmem:[%s0 + $0x28] sm:$0xff]
    %v49 = vld [vmem:[%s0 + $0x30] sm:$0xff]
    %v50 = vld [vmem:[%s0 + $0x38] sm:$0xff]
    %v51 = vpack.c.bf16 %v44, %v43
    %v52 = vpack.c.bf16 %v46, %v45
    %v53 = vpack.c.bf16 %v48, %v47
    %v54 = vpack.c.bf16 %v50, %v49
    %v56 = vlaneseq
    %v57 = vshrl.u32 %v56, 7
    %v58 = vsub.s32 0, %v57
    %v59 = vrot.slane %v42, %v58
    %v65 = vunpack.c.l.b16 %v34
    %v66 = vunpack.c.l.b16 %v35
    %v67 = vunpack.c.l.b16 %v36
    %v68 = vunpack.c.l.b16 %v37
    %v69 = vpack.c.b16 %v66, %v65
    %v70 = vpack.c.b16 %v68, %v67
    %vm73 = vcmask 261120
    %v75 = vsel %vm73, %v51, 0
    %v78 = vsel %vm73, %v52, 0
    %v81 = vsel %vm73, %v53, 0
    %v84 = vsel %vm73, %v54, 0
    %86 = vmatprep.subr.bf16.mxu0 0
    %87 = vmatpush1.bf16.msra.mxu0 0
    %88 = vmatprep.subr.bf16.mxu0 0
    %89 = vmatpush1.bf16.msra.mxu0 0
    %90 = vmatprep.subr.bf16.mxu0 0
    %91 = vmatpush1.bf16.msra.mxu0 0
    %92 = vmatprep.subr.bf16.mxu0 0
    %93 = vmatpush1.bf16.msra.mxu0 0
    %94 = vmatprep.subr.bf16.mxu0 0
    %95 = vmatpush1.bf16.msra.mxu0 0
    %96 = vmatprep.subr.bf16.mxu0 0
    %97 = vmatpush1.bf16.msra.mxu0 0
    %98 = vmatprep.subr.bf16.mxu0 0
    %99 = vmatpush1.bf16.msra.mxu0 %v70
    %100 = vmatprep.subr.bf16.mxu0 0
    %101 = vmatpush1.bf16.msra.mxu0 %v69
    %102 = vmatprep.subr.bf16.mxu0 0
    %103 = vmatpush2.bf16.msra.mxu0 0
    %104 = vmatprep.subr.bf16.mxu0 0
    %105 = vmatpush2.bf16.msra.mxu0 0
    %106 = vmatprep.subr.bf16.mxu0 0
    %107 = vmatpush2.bf16.msra.mxu0 0
    %108 = vmatprep.subr.bf16.mxu0 0
    %109 = vmatpush2.bf16.msra.mxu0 0
    %110 = vmatprep.subr.bf16.mxu0 0
    %111 = vmatpush2.bf16.msra.mxu0 0
    %112 = vmatprep.subr.bf16.mxu0 0
    %113 = vmatpush2.bf16.msra.mxu0 0
    %114 = vmatprep.subr.bf16.mxu0 0
    %115 = vmatpush2.bf16.msra.mxu0 0
    %116 = vmatprep.subr.bf16.mxu0 0
    %117 = vmatpush2.bf16.msra.mxu0 0
    %118 = vmatprep.mubr.bf16.mxu0 0
    %119 = vmatmul.mubr.bf16.gmra.mxu0 %v75
    %v120 = vpop.f32.mrf.mxu0
    %v121 = vadd.f32 %v59, %v120
    %v122 = vpop.f32.mrf.mxu0
    %v123 = vpop.f32.mrf.mxu0
    %v124 = vadd.f32 %v59, %v123
    %v125 = vpop.f32.mrf.mxu0
    %126 = vmatprep.mubr.bf16.mxu0 0
    %127 = vmatmul.mubr.bf16.gmra.mxu0 %v78
    %v128 = vpop.f32.mrf.mxu0
    %v129 = vadd.f32 %v59, %v128
    %v130 = vpop.f32.mrf.mxu0
    %v131 = vpop.f32.mrf.mxu0
    %v132 = vadd.f32 %v59, %v131
    %v133 = vpop.f32.mrf.mxu0
    %134 = vmatprep.mubr.bf16.mxu0 0
    %135 = vmatmul.mubr.bf16.gmra.mxu0 %v81
    %v136 = vpop.f32.mrf.mxu0
    %v137 = vadd.f32 %v59, %v136
    %v138 = vpop.f32.mrf.mxu0
    %v139 = vpop.f32.mrf.mxu0
    %v140 = vadd.f32 %v59, %v139
    %v141 = vpop.f32.mrf.mxu0
    %142 = vmatprep.mubr.bf16.mxu0 0
    %143 = vmatmul.mubr.bf16.gmra.mxu0 %v84
    %v144 = vpop.f32.mrf.mxu0
    %v145 = vadd.f32 %v59, %v144
    %v146 = vpop.f32.mrf.mxu0
    %v147 = vpop.f32.mrf.mxu0
    %v148 = vadd.f32 %v59, %v147
    %v149 = vpop.f32.mrf.mxu0
    %150 = vdwg.mxu0
    %v155 = vunpack.c.l.b16 %v38
    %v156 = vunpack.c.l.b16 %v39
    %v157 = vunpack.c.l.b16 %v40
    %v158 = vunpack.c.l.b16 %v41
    %v159 = vpack.c.b16 %v156, %v155
    %v160 = vpack.c.b16 %v158, %v157
    %v164 = vsel %vm73, 0, 0
    %166 = vmatprep.subr.bf16.mxu0 0
    %167 = vmatpush1.bf16.msra.mxu0 0
    %168 = vmatprep.subr.bf16.mxu0 0
    %169 = vmatpush1.bf16.msra.mxu0 0
    %170 = vmatprep.subr.bf16.mxu0 0
    %171 = vmatpush1.bf16.msra.mxu0 0
    %172 = vmatprep.subr.bf16.mxu0 0
    %173 = vmatpush1.bf16.msra.mxu0 0
    %174 = vmatprep.subr.bf16.mxu0 0
    %175 = vmatpush1.bf16.msra.mxu0 0
    %176 = vmatprep.subr.bf16.mxu0 0
    %177 = vmatpush1.bf16.msra.mxu0 0
    %178 = vmatprep.subr.bf16.mxu0 0
    %179 = vmatpush1.bf16.msra.mxu0 %v160
    %180 = vmatprep.subr.bf16.mxu0 0
    %181 = vmatpush1.bf16.msra.mxu0 %v159
    %182 = vmatprep.subr.bf16.mxu0 0
    %183 = vmatpush2.bf16.msra.mxu0 0
    %184 = vmatprep.subr.bf16.mxu0 0
    %185 = vmatpush2.bf16.msra.mxu0 0
    %186 = vmatprep.subr.bf16.mxu0 0
    %187 = vmatpush2.bf16.msra.mxu0 0
    %188 = vmatprep.subr.bf16.mxu0 0
    %189 = vmatpush2.bf16.msra.mxu0 0
    %190 = vmatprep.subr.bf16.mxu0 0
    %191 = vmatpush2.bf16.msra.mxu0 0
    %192 = vmatprep.subr.bf16.mxu0 0
    %193 = vmatpush2.bf16.msra.mxu0 0
    %194 = vmatprep.subr.bf16.mxu0 0
    %195 = vmatpush2.bf16.msra.mxu0 0
    %196 = vmatprep.subr.bf16.mxu0 0
    %197 = vmatpush2.bf16.msra.mxu0 0
    %198 = vmatprep.mubr.bf16.mxu0 0
    %199 = vmatmul.mubr.bf16.gmra.mxu0 %v164
    %v200 = vpop.f32.mrf.mxu0
    %v201 = vadd.f32 0.0, %v200
    %v202 = vpop.f32.mrf.mxu0
    %v203 = vpop.f32.mrf.mxu0
    %v204 = vpop.f32.mrf.mxu0
    %205 = vdwg.mxu0
    %v206 = vadd.f32 %v121, %v201
    %v207 = vxor.u32 %v206, 2147483648
    %v208 = vmul.f32 %v207, 1.442695
    %v209 = vpow.pop %v208
    %v210 = vadd.f32 %v209, 1.0
    %v211 = vrcp.pop %v210
    %v212 = vmul.f32 1.0, %v211
    %v213 = vtanh.pop %v206
    %v214 = vmul.f32 %v212, 0.0
    %216 = vrot.lane.b32.xlu0 %v213, 64
    %v217 = vpop.permute.xlu0 %216
    %v219 = vmul.f32 %v212, %v217
    %221 = vrot.lane.b32.xlu0 %v219, 32
    %v222 = vpop.permute.xlu0 %221
    %v224 = vadd.f32 %v214, %v222
    %v225 = vtanh.pop %v224
    %227 = vrot.lane.b32.xlu0 %v225, 64
    %v228 = vpop.permute.xlu0 %227
    %v230 = vmul.f32 %v212, %v228
    %232 = vrot.lane.b32.xlu0 %v230, 32
    %v233 = vpop.permute.xlu0 %232
    %235 = vst.msk [vmem:[#allocation2] sm:$0xff] %vm73, %v233
    %v236 = vpack.c.bf16 %v230, %v230
    %238 = vrot.lane.b32.xlu0 %v236, 32
    %v239 = vpop.permute.xlu0 %238
    %v241 = vsel %vm73, %v239, 0
    %243 = vmatprep.subr.bf16.mxu0 0
    %244 = vmatpush1.bf16.msra.mxu0 0
    %245 = vmatprep.subr.bf16.mxu0 0
    %246 = vmatpush1.bf16.msra.mxu0 0
    %247 = vmatprep.subr.bf16.mxu0 0
    %248 = vmatpush1.bf16.msra.mxu0 0
    %249 = vmatprep.subr.bf16.mxu0 0
    %250 = vmatpush1.bf16.msra.mxu0 0
    %251 = vmatprep.subr.bf16.mxu0 0
    %252 = vmatpush1.bf16.msra.mxu0 0
    %253 = vmatprep.subr.bf16.mxu0 0
    %254 = vmatpush1.bf16.msra.mxu0 0
    %255 = vmatprep.subr.bf16.mxu0 0
    %256 = vmatpush1.bf16.msra.mxu0 %v160
    %257 = vmatprep.subr.bf16.mxu0 0
    %258 = vmatpush1.bf16.msra.mxu0 %v159
    %259 = vmatprep.subr.bf16.mxu0 0
    %260 = vmatpush2.bf16.msra.mxu0 0
    %261 = vmatprep.subr.bf16.mxu0 0
    %262 = vmatpush2.bf16.msra.mxu0 0
    %263 = vmatprep.subr.bf16.mxu0 0
    %264 = vmatpush2.bf16.msra.mxu0 0
    %265 = vmatprep.subr.bf16.mxu0 0
    %266 = vmatpush2.bf16.msra.mxu0 0
    %267 = vmatprep.subr.bf16.mxu0 0
    %268 = vmatpush2.bf16.msra.mxu0 0
    %269 = vmatprep.subr.bf16.mxu0 0
    %270 = vmatpush2.bf16.msra.mxu0 0
    %271 = vmatprep.subr.bf16.mxu0 0
    %272 = vmatpush2.bf16.msra.mxu0 0
    %273 = vmatprep.subr.bf16.mxu0 0
    %274 = vmatpush2.bf16.msra.mxu0 0
    %275 = vmatprep.mubr.bf16.mxu0 0
    %276 = vmatmul.mubr.bf16.gmra.mxu0 %v241
    %v277 = vpop.f32.mrf.mxu0
    %v278 = vadd.f32 0.0, %v277
    %v279 = vpop.f32.mrf.mxu0
    %v280 = vpop.f32.mrf.mxu0
    %v281 = vpop.f32.mrf.mxu0
    %282 = vdwg.mxu0
    %v283 = vadd.f32 %v124, %v278
    %v284 = vxor.u32 %v283, 2147483648
    %v285 = vmul.f32 %v284, 1.442695
    %v286 = vpow.pop %v285
    %v287 = vadd.f32 %v286, 1.0
    %v288 = vrcp.pop %v287
    %v289 = vmul.f32 1.0, %v288
    %v290 = vtanh.pop %v283
    %v291 = vmul.f32 %v289, %v224
    %293 = vrot.lane.b32.xlu0 %v290, 64
    %v294 = vpop.permute.xlu0 %293
    %v296 = vmul.f32 %v289, %v294
    %298 = vrot.lane.b32.xlu0 %v296, 32
    %v299 = vpop.permute.xlu0 %298
    %v301 = vadd.f32 %v291, %v299
    %v302 = vtanh.pop %v301
    %304 = vrot.lane.b32.xlu0 %v302, 64
    %v305 = vpop.permute.xlu0 %304
    %v307 = vmul.f32 %v289, %v305
    %309 = vrot.lane.b32.xlu0 %v307, 32
    %v310 = vpop.permute.xlu0 %309
    %312 = vst.msk [vmem:[#allocation2 + $0x8] sm:$0xff] %vm73, %v310
    %v313 = vpack.c.bf16 %v307, %v307
    %315 = vrot.lane.b32.xlu0 %v313, 32
    %v316 = vpop.permute.xlu0 %315
    %v318 = vsel %vm73, %v316, 0
    %320 = vmatprep.subr.bf16.mxu0 0
    %321 = vmatpush1.bf16.msra.mxu0 0
    %322 = vmatprep.subr.bf16.mxu0 0
    %323 = vmatpush1.bf16.msra.mxu0 0
    %324 = vmatprep.subr.bf16.mxu0 0
    %325 = vmatpush1.bf16.msra.mxu0 0
    %326 = vmatprep.subr.bf16.mxu0 0
    %327 = vmatpush1.bf16.msra.mxu0 0
    %328 = vmatprep.subr.bf16.mxu0 0
    %329 = vmatpush1.bf16.msra.mxu0 0
    %330 = vmatprep.subr.bf16.mxu0 0
    %331 = vmatpush1.bf16.msra.mxu0 0
    %332 = vmatprep.subr.bf16.mxu0 0
    %333 = vmatpush1.bf16.msra.mxu0 %v160
    %334 = vmatprep.subr.bf16.mxu0 0
    %335 = vmatpush1.bf16.msra.mxu0 %v159
    %336 = vmatprep.subr.bf16.mxu0 0
    %337 = vmatpush2.bf16.msra.mxu0 0
    %338 = vmatprep.subr.bf16.mxu0 0
    %339 = vmatpush2.bf16.msra.mxu0 0
    %340 = vmatprep.subr.bf16.mxu0 0
    %341 = vmatpush2.bf16.msra.mxu0 0
    %342 = vmatprep.subr.bf16.mxu0 0
    %343 = vmatpush2.bf16.msra.mxu0 0
    %344 = vmatprep.subr.bf16.mxu0 0
    %345 = vmatpush2.bf16.msra.mxu0 0
    %346 = vmatprep.subr.bf16.mxu0 0
    %347 = vmatpush2.bf16.msra.mxu0 0
    %348 = vmatprep.subr.bf16.mxu0 0
    %349 = vmatpush2.bf16.msra.mxu0 0
    %350 = vmatprep.subr.bf16.mxu0 0
    %351 = vmatpush2.bf16.msra.mxu0 0
    %352 = vmatprep.mubr.bf16.mxu0 0
    %353 = vmatmul.mubr.bf16.gmra.mxu0 %v318
    %v354 = vpop.f32.mrf.mxu0
    %v355 = vadd.f32 0.0, %v354
    %v356 = vpop.f32.mrf.mxu0
    %v357 = vpop.f32.mrf.mxu0
    %v358 = vpop.f32.mrf.mxu0
    %359 = vdwg.mxu0
    %v360 = vadd.f32 %v129, %v355
    %v361 = vxor.u32 %v360, 2147483648
    %v362 = vmul.f32 %v361, 1.442695
    %v363 = vpow.pop %v362
    %v364 = vadd.f32 %v363, 1.0
    %v365 = vrcp.pop %v364
    %v366 = vmul.f32 1.0, %v365
    %v367 = vtanh.pop %v360
    %v368 = vmul.f32 %v366, %v301
    %370 = vrot.lane.b32.xlu0 %v367, 64
    %v371 = vpop.permute.xlu0 %370
    %v373 = vmul.f32 %v366, %v371
    %375 = vrot.lane.b32.xlu0 %v373, 32
    %v376 = vpop.permute.xlu0 %375
    %v378 = vadd.f32 %v368, %v376
    %v379 = vtanh.pop %v378
    %381 = vrot.lane.b32.xlu0 %v379, 64
    %v382 = vpop.permute.xlu0 %381
    %v384 = vmul.f32 %v366, %v382
    %386 = vrot.lane.b32.xlu0 %v384, 32
    %v387 = vpop.permute.xlu0 %386
    %389 = vst.msk [vmem:[#allocation2 + $0x10] sm:$0xff] %vm73, %v387
    %v390 = vpack.c.bf16 %v384, %v384
    %392 = vrot.lane.b32.xlu0 %v390, 32
    %v393 = vpop.permute.xlu0 %392
    %v395 = vsel %vm73, %v393, 0
    %397 = vmatprep.subr.bf16.mxu0 0
    %398 = vmatpush1.bf16.msra.mxu0 0
    %399 = vmatprep.subr.bf16.mxu0 0
    %400 = vmatpush1.bf16.msra.mxu0 0
    %401 = vmatprep.subr.bf16.mxu0 0
    %402 = vmatpush1.bf16.msra.mxu0 0
    %403 = vmatprep.subr.bf16.mxu0 0
    %404 = vmatpush1.bf16.msra.mxu0 0
    %405 = vmatprep.subr.bf16.mxu0 0
    %406 = vmatpush1.bf16.msra.mxu0 0
    %407 = vmatprep.subr.bf16.mxu0 0
    %408 = vmatpush1.bf16.msra.mxu0 0
    %409 = vmatprep.subr.bf16.mxu0 0
    %410 = vmatpush1.bf16.msra.mxu0 %v160
    %411 = vmatprep.subr.bf16.mxu0 0
    %412 = vmatpush1.bf16.msra.mxu0 %v159
    %413 = vmatprep.subr.bf16.mxu0 0
    %414 = vmatpush2.bf16.msra.mxu0 0
    %415 = vmatprep.subr.bf16.mxu0 0
    %416 = vmatpush2.bf16.msra.mxu0 0
    %417 = vmatprep.subr.bf16.mxu0 0
    %418 = vmatpush2.bf16.msra.mxu0 0
    %419 = vmatprep.subr.bf16.mxu0 0
    %420 = vmatpush2.bf16.msra.mxu0 0
    %421 = vmatprep.subr.bf16.mxu0 0
    %422 = vmatpush2.bf16.msra.mxu0 0
    %423 = vmatprep.subr.bf16.mxu0 0
    %424 = vmatpush2.bf16.msra.mxu0 0
    %425 = vmatprep.subr.bf16.mxu0 0
    %426 = vmatpush2.bf16.msra.mxu0 0
    %427 = vmatprep.subr.bf16.mxu0 0
    %428 = vmatpush2.bf16.msra.mxu0 0
    %429 = vmatprep.mubr.bf16.mxu0 0
    %430 = vmatmul.mubr.bf16.gmra.mxu0 %v395
    %v431 = vpop.f32.mrf.mxu0
    %v432 = vadd.f32 0.0, %v431
    %v433 = vpop.f32.mrf.mxu0
    %v434 = vpop.f32.mrf.mxu0
    %v435 = vpop.f32.mrf.mxu0
    %436 = vdwg.mxu0
    %v437 = vadd.f32 %v132, %v432
    %v438 = vxor.u32 %v437, 2147483648
    %v439 = vmul.f32 %v438, 1.442695
    %v440 = vpow.pop %v439
    %v441 = vadd.f32 %v440, 1.0
    %v442 = vrcp.pop %v441
    %v443 = vmul.f32 1.0, %v442
    %v444 = vtanh.pop %v437
    %v445 = vmul.f32 %v443, %v378
    %447 = vrot.lane.b32.xlu0 %v444, 64
    %v448 = vpop.permute.xlu0 %447
    %v450 = vmul.f32 %v443, %v448
    %452 = vrot.lane.b32.xlu0 %v450, 32
    %v453 = vpop.permute.xlu0 %452
    %v455 = vadd.f32 %v445, %v453
    %v456 = vtanh.pop %v455
    %458 = vrot.lane.b32.xlu0 %v456, 64
    %v459 = vpop.permute.xlu0 %458
    %v461 = vmul.f32 %v443, %v459
    %463 = vrot.lane.b32.xlu0 %v461, 32
    %v464 = vpop.permute.xlu0 %463
    %466 = vst.msk [vmem:[#allocation2 + $0x18] sm:$0xff] %vm73, %v464
    %v467 = vpack.c.bf16 %v461, %v461
    %469 = vrot.lane.b32.xlu0 %v467, 32
    %v470 = vpop.permute.xlu0 %469
    %v472 = vsel %vm73, %v470, 0
    %474 = vmatprep.subr.bf16.mxu0 0
    %475 = vmatpush1.bf16.msra.mxu0 0
    %476 = vmatprep.subr.bf16.mxu0 0
    %477 = vmatpush1.bf16.msra.mxu0 0
    %478 = vmatprep.subr.bf16.mxu0 0
    %479 = vmatpush1.bf16.msra.mxu0 0
    %480 = vmatprep.subr.bf16.mxu0 0
    %481 = vmatpush1.bf16.msra.mxu0 0
    %482 = vmatprep.subr.bf16.mxu0 0
    %483 = vmatpush1.bf16.msra.mxu0 0
    %484 = vmatprep.subr.bf16.mxu0 0
    %485 = vmatpush1.bf16.msra.mxu0 0
    %486 = vmatprep.subr.bf16.mxu0 0
    %487 = vmatpush1.bf16.msra.mxu0 %v160
    %488 = vmatprep.subr.bf16.mxu0 0
    %489 = vmatpush1.bf16.msra.mxu0 %v159
    %490 = vmatprep.subr.bf16.mxu0 0
    %491 = vmatpush2.bf16.msra.mxu0 0
    %492 = vmatprep.subr.bf16.mxu0 0
    %493 = vmatpush2.bf16.msra.mxu0 0
    %494 = vmatprep.subr.bf16.mxu0 0
    %495 = vmatpush2.bf16.msra.mxu0 0
    %496 = vmatprep.subr.bf16.mxu0 0
    %497 = vmatpush2.bf16.msra.mxu0 0
    %498 = vmatprep.subr.bf16.mxu0 0
    %499 = vmatpush2.bf16.msra.mxu0 0
    %500 = vmatprep.subr.bf16.mxu0 0
    %501 = vmatpush2.bf16.msra.mxu0 0
    %502 = vmatprep.subr.bf16.mxu0 0
    %503 = vmatpush2.bf16.msra.mxu0 0
    %504 = vmatprep.subr.bf16.mxu0 0
    %505 = vmatpush2.bf16.msra.mxu0 0
    %506 = vmatprep.mubr.bf16.mxu0 0
    %507 = vmatmul.mubr.bf16.gmra.mxu0 %v472
    %v508 = vpop.f32.mrf.mxu0
    %v509 = vadd.f32 0.0, %v508
    %v510 = vpop.f32.mrf.mxu0
    %v511 = vpop.f32.mrf.mxu0
    %v512 = vpop.f32.mrf.mxu0
    %513 = vdwg.mxu0
    %v514 = vadd.f32 %v137, %v509
    %v515 = vxor.u32 %v514, 2147483648
    %v516 = vmul.f32 %v515, 1.442695
    %v517 = vpow.pop %v516
    %v518 = vadd.f32 %v517, 1.0
    %v519 = vrcp.pop %v518
    %v520 = vmul.f32 1.0, %v519
    %v521 = vtanh.pop %v514
    %v522 = vmul.f32 %v520, %v455
    %524 = vrot.lane.b32.xlu0 %v521, 64
    %v525 = vpop.permute.xlu0 %524
    %v527 = vmul.f32 %v520, %v525
    %529 = vrot.lane.b32.xlu0 %v527, 32
    %v530 = vpop.permute.xlu0 %529
    %v532 = vadd.f32 %v522, %v530
    %v533 = vtanh.pop %v532
    %535 = vrot.lane.b32.xlu0 %v533, 64
    %v536 = vpop.permute.xlu0 %535
    %v538 = vmul.f32 %v520, %v536
    %540 = vrot.lane.b32.xlu0 %v538, 32
    %v541 = vpop.permute.xlu0 %540
    %543 = vst.msk [vmem:[#allocation2 + $0x20] sm:$0xff] %vm73, %v541
    %v544 = vpack.c.bf16 %v538, %v538
    %546 = vrot.lane.b32.xlu0 %v544, 32
    %v547 = vpop.permute.xlu0 %546
    %v549 = vsel %vm73, %v547, 0
    %551 = vmatprep.subr.bf16.mxu0 0
    %552 = vmatpush1.bf16.msra.mxu0 0
    %553 = vmatprep.subr.bf16.mxu0 0
    %554 = vmatpush1.bf16.msra.mxu0 0
    %555 = vmatprep.subr.bf16.mxu0 0
    %556 = vmatpush1.bf16.msra.mxu0 0
    %557 = vmatprep.subr.bf16.mxu0 0
    %558 = vmatpush1.bf16.msra.mxu0 0
    %559 = vmatprep.subr.bf16.mxu0 0
    %560 = vmatpush1.bf16.msra.mxu0 0
    %561 = vmatprep.subr.bf16.mxu0 0
    %562 = vmatpush1.bf16.msra.mxu0 0
    %563 = vmatprep.subr.bf16.mxu0 0
    %564 = vmatpush1.bf16.msra.mxu0 %v160
    %565 = vmatprep.subr.bf16.mxu0 0
    %566 = vmatpush1.bf16.msra.mxu0 %v159
    %567 = vmatprep.subr.bf16.mxu0 0
    %568 = vmatpush2.bf16.msra.mxu0 0
    %569 = vmatprep.subr.bf16.mxu0 0
    %570 = vmatpush2.bf16.msra.mxu0 0
    %571 = vmatprep.subr.bf16.mxu0 0
    %572 = vmatpush2.bf16.msra.mxu0 0
    %573 = vmatprep.subr.bf16.mxu0 0
    %574 = vmatpush2.bf16.msra.mxu0 0
    %575 = vmatprep.subr.bf16.mxu0 0
    %576 = vmatpush2.bf16.msra.mxu0 0
    %577 = vmatprep.subr.bf16.mxu0 0
    %578 = vmatpush2.bf16.msra.mxu0 0
    %579 = vmatprep.subr.bf16.mxu0 0
    %580 = vmatpush2.bf16.msra.mxu0 0
    %581 = vmatprep.subr.bf16.mxu0 0
    %582 = vmatpush2.bf16.msra.mxu0 0
    %583 = vmatprep.mubr.bf16.mxu0 0
    %584 = vmatmul.mubr.bf16.gmra.mxu0 %v549
    %v585 = vpop.f32.mrf.mxu0
    %v586 = vadd.f32 0.0, %v585
    %v587 = vpop.f32.mrf.mxu0
    %v588 = vpop.f32.mrf.mxu0
    %v589 = vpop.f32.mrf.mxu0
    %590 = vdwg.mxu0
    %v591 = vadd.f32 %v140, %v586
    %v592 = vxor.u32 %v591, 2147483648
    %v593 = vmul.f32 %v592, 1.442695
    %v594 = vpow.pop %v593
    %v595 = vadd.f32 %v594, 1.0
    %v596 = vrcp.pop %v595
    %v597 = vmul.f32 1.0, %v596
    %v598 = vtanh.pop %v591
    %v599 = vmul.f32 %v597, %v532
    %601 = vrot.lane.b32.xlu0 %v598, 64
    %v602 = vpop.permute.xlu0 %601
    %v604 = vmul.f32 %v597, %v602
    %606 = vrot.lane.b32.xlu0 %v604, 32
    %v607 = vpop.permute.xlu0 %606
    %v609 = vadd.f32 %v599, %v607
    %v610 = vtanh.pop %v609
    %612 = vrot.lane.b32.xlu0 %v610, 64
    %v613 = vpop.permute.xlu0 %612
    %v615 = vmul.f32 %v597, %v613
    %617 = vrot.lane.b32.xlu0 %v615, 32
    %v618 = vpop.permute.xlu0 %617
    %620 = vst.msk [vmem:[#allocation2 + $0x28] sm:$0xff] %vm73, %v618
    %v621 = vpack.c.bf16 %v615, %v615
    %623 = vrot.lane.b32.xlu0 %v621, 32
    %v624 = vpop.permute.xlu0 %623
    %v626 = vsel %vm73, %v624, 0
    %628 = vmatprep.subr.bf16.mxu0 0
    %629 = vmatpush1.bf16.msra.mxu0 0
    %630 = vmatprep.subr.bf16.mxu0 0
    %631 = vmatpush1.bf16.msra.mxu0 0
    %632 = vmatprep.subr.bf16.mxu0 0
    %633 = vmatpush1.bf16.msra.mxu0 0
    %634 = vmatprep.subr.bf16.mxu0 0
    %635 = vmatpush1.bf16.msra.mxu0 0
    %636 = vmatprep.subr.bf16.mxu0 0
    %637 = vmatpush1.bf16.msra.mxu0 0
    %638 = vmatprep.subr.bf16.mxu0 0
    %639 = vmatpush1.bf16.msra.mxu0 0
    %640 = vmatprep.subr.bf16.mxu0 0
    %641 = vmatpush1.bf16.msra.mxu0 %v160
    %642 = vmatprep.subr.bf16.mxu0 0
    %643 = vmatpush1.bf16.msra.mxu0 %v159
    %644 = vmatprep.subr.bf16.mxu0 0
    %645 = vmatpush2.bf16.msra.mxu0 0
    %646 = vmatprep.subr.bf16.mxu0 0
    %647 = vmatpush2.bf16.msra.mxu0 0
    %648 = vmatprep.subr.bf16.mxu0 0
    %649 = vmatpush2.bf16.msra.mxu0 0
    %650 = vmatprep.subr.bf16.mxu0 0
    %651 = vmatpush2.bf16.msra.mxu0 0
    %652 = vmatprep.subr.bf16.mxu0 0
    %653 = vmatpush2.bf16.msra.mxu0 0
    %654 = vmatprep.subr.bf16.mxu0 0
    %655 = vmatpush2.bf16.msra.mxu0 0
    %656 = vmatprep.subr.bf16.mxu0 0
    %657 = vmatpush2.bf16.msra.mxu0 0
    %658 = vmatprep.subr.bf16.mxu0 0
    %659 = vmatpush2.bf16.msra.mxu0 0
    %660 = vmatprep.mubr.bf16.mxu0 0
    %661 = vmatmul.mubr.bf16.gmra.mxu0 %v626
    %v662 = vpop.f32.mrf.mxu0
    %v663 = vadd.f32 0.0, %v662
    %v664 = vpop.f32.mrf.mxu0
    %v665 = vpop.f32.mrf.mxu0
    %v666 = vpop.f32.mrf.mxu0
    %667 = vdwg.mxu0
    %v668 = vadd.f32 %v145, %v663
    %v669 = vxor.u32 %v668, 2147483648
    %v670 = vmul.f32 %v669, 1.442695
    %v671 = vpow.pop %v670
    %v672 = vadd.f32 %v671, 1.0
    %v673 = vrcp.pop %v672
    %v674 = vmul.f32 1.0, %v673
    %v675 = vtanh.pop %v668
    %v676 = vmul.f32 %v674, %v609
    %678 = vrot.lane.b32.xlu0 %v675, 64
    %v679 = vpop.permute.xlu0 %678
    %v681 = vmul.f32 %v674, %v679
    %683 = vrot.lane.b32.xlu0 %v681, 32
    %v684 = vpop.permute.xlu0 %683
    %v686 = vadd.f32 %v676, %v684
    %v687 = vtanh.pop %v686
    %689 = vrot.lane.b32.xlu0 %v687, 64
    %v690 = vpop.permute.xlu0 %689
    %v692 = vmul.f32 %v674, %v690
    %694 = vrot.lane.b32.xlu0 %v692, 32
    %v695 = vpop.permute.xlu0 %694
    %697 = vst.msk [vmem:[#allocation2 + $0x30] sm:$0xff] %vm73, %v695
    %v698 = vpack.c.bf16 %v692, %v692
    %700 = vrot.lane.b32.xlu0 %v698, 32
    %v701 = vpop.permute.xlu0 %700
    %v703 = vsel %vm73, %v701, 0
    %705 = vmatprep.subr.bf16.mxu0 0
    %706 = vmatpush1.bf16.msra.mxu0 0
    %707 = vmatprep.subr.bf16.mxu0 0
    %708 = vmatpush1.bf16.msra.mxu0 0
    %709 = vmatprep.subr.bf16.mxu0 0
    %710 = vmatpush1.bf16.msra.mxu0 0
    %711 = vmatprep.subr.bf16.mxu0 0
    %712 = vmatpush1.bf16.msra.mxu0 0
    %713 = vmatprep.subr.bf16.mxu0 0
    %714 = vmatpush1.bf16.msra.mxu0 0
    %715 = vmatprep.subr.bf16.mxu0 0
    %716 = vmatpush1.bf16.msra.mxu0 0
    %717 = vmatprep.subr.bf16.mxu0 0
    %718 = vmatpush1.bf16.msra.mxu0 %v160
    %719 = vmatprep.subr.bf16.mxu0 0
    %720 = vmatpush1.bf16.msra.mxu0 %v159
    %721 = vmatprep.subr.bf16.mxu0 0
    %722 = vmatpush2.bf16.msra.mxu0 0
    %723 = vmatprep.subr.bf16.mxu0 0
    %724 = vmatpush2.bf16.msra.mxu0 0
    %725 = vmatprep.subr.bf16.mxu0 0
    %726 = vmatpush2.bf16.msra.mxu0 0
    %727 = vmatprep.subr.bf16.mxu0 0
    %728 = vmatpush2.bf16.msra.mxu0 0
    %729 = vmatprep.subr.bf16.mxu0 0
    %730 = vmatpush2.bf16.msra.mxu0 0
    %731 = vmatprep.subr.bf16.mxu0 0
    %732 = vmatpush2.bf16.msra.mxu0 0
    %733 = vmatprep.subr.bf16.mxu0 0
    %734 = vmatpush2.bf16.msra.mxu0 0
    %735 = vmatprep.subr.bf16.mxu0 0
    %736 = vmatpush2.bf16.msra.mxu0 0
    %737 = vmatprep.mubr.bf16.mxu0 0
    %738 = vmatmul.mubr.bf16.gmra.mxu0 %v703
    %v739 = vpop.f32.mrf.mxu0
    %v740 = vadd.f32 0.0, %v739
    %v741 = vpop.f32.mrf.mxu0
    %v742 = vpop.f32.mrf.mxu0
    %v743 = vpop.f32.mrf.mxu0
    %744 = vdwg.mxu0
    %v745 = vadd.f32 %v148, %v740
    %v746 = vxor.u32 %v745, 2147483648
    %v747 = vmul.f32 %v746, 1.442695
    %v748 = vpow.pop %v747
    %v749 = vadd.f32 %v748, 1.0
    %v750 = vrcp.pop %v749
    %v751 = vmul.f32 1.0, %v750
    %v752 = vtanh.pop %v745
    %v753 = vmul.f32 %v751, %v686
    %755 = vrot.lane.b32.xlu0 %v752, 64
    %v756 = vpop.permute.xlu0 %755
    %v758 = vmul.f32 %v751, %v756
    %760 = vrot.lane.b32.xlu0 %v758, 32
    %v761 = vpop.permute.xlu0 %760
    %v763 = vadd.f32 %v753, %v761
    %v764 = vtanh.pop %v763
    %766 = vrot.lane.b32.xlu0 %v764, 64
    %v767 = vpop.permute.xlu0 %766
    %v769 = vmul.f32 %v751, %v767
    %771 = vrot.lane.b32.xlu0 %v769, 32
    %v772 = vpop.permute.xlu0 %771
    %774 = vst.msk [vmem:[#allocation2 + $0x38] sm:$0xff] %vm73, %v772
    %v775 = vld [vmem:[%s4] sm:$0xf]
    %v776 = vld [vmem:[%s4 + $0x4] sm:$0xf]
    %v777 = vld [vmem:[%s4 + $0x8] sm:$0xf]
    %v778 = vld [vmem:[%s4 + $0xc] sm:$0xf]
    %v779 = vld [vmem:[%s5] sm:$0xf]
    %v780 = vld [vmem:[%s5 + $0x4] sm:$0xf]
    %v781 = vld [vmem:[%s5 + $0x8] sm:$0xf]
    %v782 = vld [vmem:[%s5 + $0xc] sm:$0xf]
    %v783 = vld [vmem:[%s6] sm:$0x1]
    %v784 = vld [vmem:[#allocation2] sm:$0xff]
    %v785 = vld [vmem:[#allocation2 + $0x8] sm:$0xff]
    %v786 = vld [vmem:[#allocation2 + $0x10] sm:$0xff]
    %v787 = vld [vmem:[#allocation2 + $0x18] sm:$0xff]
    %v788 = vld [vmem:[#allocation2 + $0x20] sm:$0xff]
    %v789 = vld [vmem:[#allocation2 + $0x28] sm:$0xff]
    %v790 = vld [vmem:[#allocation2 + $0x30] sm:$0xff]
    %v791 = vld [vmem:[#allocation2 + $0x38] sm:$0xff]
    %v792 = vpack.c.bf16 %v785, %v784
    %v793 = vpack.c.bf16 %v787, %v786
    %v794 = vpack.c.bf16 %v789, %v788
    %v795 = vpack.c.bf16 %v791, %v790
    %v797 = vlaneseq
    %v798 = vshrl.u32 %v797, 7
    %v799 = vsub.s32 0, %v798
    %v800 = vrot.slane %v783, %v799
    %v806 = vunpack.c.l.b16 %v775
    %v807 = vunpack.c.l.b16 %v776
    %v808 = vunpack.c.l.b16 %v777
    %v809 = vunpack.c.l.b16 %v778
    %v810 = vpack.c.b16 %v807, %v806
    %v811 = vpack.c.b16 %v809, %v808
    %v815 = vsel %vm73, %v792, 0
    %v818 = vsel %vm73, %v793, 0
    %v821 = vsel %vm73, %v794, 0
    %v824 = vsel %vm73, %v795, 0
    %826 = vmatprep.subr.bf16.mxu0 0
    %827 = vmatpush1.bf16.msra.mxu0 0
    %828 = vmatprep.subr.bf16.mxu0 0
    %829 = vmatpush1.bf16.msra.mxu0 0
    %830 = vmatprep.subr.bf16.mxu0 0
    %831 = vmatpush1.bf16.msra.mxu0 0
    %832 = vmatprep.subr.bf16.mxu0 0
    %833 = vmatpush1.bf16.msra.mxu0 0
    %834 = vmatprep.subr.bf16.mxu0 0
    %835 = vmatpush1.bf16.msra.mxu0 0
    %836 = vmatprep.subr.bf16.mxu0 0
    %837 = vmatpush1.bf16.msra.mxu0 0
    %838 = vmatprep.subr.bf16.mxu0 0
    %839 = vmatpush1.bf16.msra.mxu0 %v811
    %840 = vmatprep.subr.bf16.mxu0 0
    %841 = vmatpush1.bf16.msra.mxu0 %v810
    %842 = vmatprep.subr.bf16.mxu0 0
    %843 = vmatpush2.bf16.msra.mxu0 0
    %844 = vmatprep.subr.bf16.mxu0 0
    %845 = vmatpush2.bf16.msra.mxu0 0
    %846 = vmatprep.subr.bf16.mxu0 0
    %847 = vmatpush2.bf16.msra.mxu0 0
    %848 = vmatprep.subr.bf16.mxu0 0
    %849 = vmatpush2.bf16.msra.mxu0 0
    %850 = vmatprep.subr.bf16.mxu0 0
    %851 = vmatpush2.bf16.msra.mxu0 0
    %852 = vmatprep.subr.bf16.mxu0 0
    %853 = vmatpush2.bf16.msra.mxu0 0
    %854 = vmatprep.subr.bf16.mxu0 0
    %855 = vmatpush2.bf16.msra.mxu0 0
    %856 = vmatprep.subr.bf16.mxu0 0
    %857 = vmatpush2.bf16.msra.mxu0 0
    %858 = vmatprep.mubr.bf16.mxu0 0
    %859 = vmatmul.mubr.bf16.gmra.mxu0 %v815
    %v860 = vpop.f32.mrf.mxu0
    %v861 = vadd.f32 %v800, %v860
    %v862 = vpop.f32.mrf.mxu0
    %v863 = vpop.f32.mrf.mxu0
    %v864 = vadd.f32 %v800, %v863
    %v865 = vpop.f32.mrf.mxu0
    %866 = vmatprep.mubr.bf16.mxu0 0
    %867 = vmatmul.mubr.bf16.gmra.mxu0 %v818
    %v868 = vpop.f32.mrf.mxu0
    %v869 = vadd.f32 %v800, %v868
    %v870 = vpop.f32.mrf.mxu0
    %v871 = vpop.f32.mrf.mxu0
    %v872 = vadd.f32 %v800, %v871
    %v873 = vpop.f32.mrf.mxu0
    %874 = vmatprep.mubr.bf16.mxu0 0
    %875 = vmatmul.mubr.bf16.gmra.mxu0 %v821
    %v876 = vpop.f32.mrf.mxu0
    %v877 = vadd.f32 %v800, %v876
    %v878 = vpop.f32.mrf.mxu0
    %v879 = vpop.f32.mrf.mxu0
    %v880 = vadd.f32 %v800, %v879
    %v881 = vpop.f32.mrf.mxu0
    %882 = vmatprep.mubr.bf16.mxu0 0
    %883 = vmatmul.mubr.bf16.gmra.mxu0 %v824
    %v884 = vpop.f32.mrf.mxu0
    %v885 = vadd.f32 %v800, %v884
    %v886 = vpop.f32.mrf.mxu0
    %v887 = vpop.f32.mrf.mxu0
    %v888 = vadd.f32 %v800, %v887
    %v889 = vpop.f32.mrf.mxu0
    %890 = vdwg.mxu0
    %v895 = vunpack.c.l.b16 %v779
    %v896 = vunpack.c.l.b16 %v780
    %v897 = vunpack.c.l.b16 %v781
    %v898 = vunpack.c.l.b16 %v782
    %v899 = vpack.c.b16 %v896, %v895
    %v900 = vpack.c.b16 %v898, %v897
    %903 = vmatprep.subr.bf16.mxu0 0
    %904 = vmatpush1.bf16.msra.mxu0 0
    %905 = vmatprep.subr.bf16.mxu0 0
    %906 = vmatpush1.bf16.msra.mxu0 0
    %907 = vmatprep.subr.bf16.mxu0 0
    %908 = vmatpush1.bf16.msra.mxu0 0
    %909 = vmatprep.subr.bf16.mxu0 0
    %910 = vmatpush1.bf16.msra.mxu0 0
    %911 = vmatprep.subr.bf16.mxu0 0
    %912 = vmatpush1.bf16.msra.mxu0 0
    %913 = vmatprep.subr.bf16.mxu0 0
    %914 = vmatpush1.bf16.msra.mxu0 0
    %915 = vmatprep.subr.bf16.mxu0 0
    %916 = vmatpush1.bf16.msra.mxu0 %v900
    %917 = vmatprep.subr.bf16.mxu0 0
    %918 = vmatpush1.bf16.msra.mxu0 %v899
    %919 = vmatprep.subr.bf16.mxu0 0
    %920 = vmatpush2.bf16.msra.mxu0 0
    %921 = vmatprep.subr.bf16.mxu0 0
    %922 = vmatpush2.bf16.msra.mxu0 0
    %923 = vmatprep.subr.bf16.mxu0 0
    %924 = vmatpush2.bf16.msra.mxu0 0
    %925 = vmatprep.subr.bf16.mxu0 0
    %926 = vmatpush2.bf16.msra.mxu0 0
    %927 = vmatprep.subr.bf16.mxu0 0
    %928 = vmatpush2.bf16.msra.mxu0 0
    %929 = vmatprep.subr.bf16.mxu0 0
    %930 = vmatpush2.bf16.msra.mxu0 0
    %931 = vmatprep.subr.bf16.mxu0 0
    %932 = vmatpush2.bf16.msra.mxu0 0
    %933 = vmatprep.subr.bf16.mxu0 0
    %934 = vmatpush2.bf16.msra.mxu0 0
    %935 = vmatprep.mubr.bf16.mxu0 0
    %936 = vmatmul.mubr.bf16.gmra.mxu0 %v164
    %v937 = vpop.f32.mrf.mxu0
    %v938 = vadd.f32 0.0, %v937
    %v939 = vpop.f32.mrf.mxu0
    %v940 = vpop.f32.mrf.mxu0
    %v941 = vpop.f32.mrf.mxu0
    %942 = vdwg.mxu0
    %v943 = vadd.f32 %v861, %v938
    %v944 = vxor.u32 %v943, 2147483648
    %v945 = vmul.f32 %v944, 1.442695
    %v946 = vpow.pop %v945
    %v947 = vadd.f32 %v946, 1.0
    %v948 = vrcp.pop %v947
    %v949 = vmul.f32 1.0, %v948
    %v950 = vtanh.pop %v943
    %v951 = vmul.f32 %v949, 0.0
    %953 = vrot.lane.b32.xlu0 %v950, 64
    %v954 = vpop.permute.xlu0 %953
    %v956 = vmul.f32 %v949, %v954
    %958 = vrot.lane.b32.xlu0 %v956, 32
    %v959 = vpop.permute.xlu0 %958
    %v961 = vadd.f32 %v951, %v959
    %v962 = vtanh.pop %v961
    %964 = vrot.lane.b32.xlu0 %v962, 64
    %v965 = vpop.permute.xlu0 %964
    %v967 = vmul.f32 %v949, %v965
    %v968 = vpack.c.bf16 %v967, %v967
    %970 = vrot.lane.b32.xlu0 %v968, 32
    %v971 = vpop.permute.xlu0 %970
    %v973 = vsel %vm73, %v971, 0
    %975 = vmatprep.subr.bf16.mxu0 0
    %976 = vmatpush1.bf16.msra.mxu0 0
    %977 = vmatprep.subr.bf16.mxu0 0
    %978 = vmatpush1.bf16.msra.mxu0 0
    %979 = vmatprep.subr.bf16.mxu0 0
    %980 = vmatpush1.bf16.msra.mxu0 0
    %981 = vmatprep.subr.bf16.mxu0 0
    %982 = vmatpush1.bf16.msra.mxu0 0
    %983 = vmatprep.subr.bf16.mxu0 0
    %984 = vmatpush1.bf16.msra.mxu0 0
    %985 = vmatprep.subr.bf16.mxu0 0
    %986 = vmatpush1.bf16.msra.mxu0 0
    %987 = vmatprep.subr.bf16.mxu0 0
    %988 = vmatpush1.bf16.msra.mxu0 %v900
    %989 = vmatprep.subr.bf16.mxu0 0
    %990 = vmatpush1.bf16.msra.mxu0 %v899
    %991 = vmatprep.subr.bf16.mxu0 0
    %992 = vmatpush2.bf16.msra.mxu0 0
    %993 = vmatprep.subr.bf16.mxu0 0
    %994 = vmatpush2.bf16.msra.mxu0 0
    %995 = vmatprep.subr.bf16.mxu0 0
    %996 = vmatpush2.bf16.msra.mxu0 0
    %997 = vmatprep.subr.bf16.mxu0 0
    %998 = vmatpush2.bf16.msra.mxu0 0
    %999 = vmatprep.subr.bf16.mxu0 0
    %1000 = vmatpush2.bf16.msra.mxu0 0
    %1001 = vmatprep.subr.bf16.mxu0 0
    %1002 = vmatpush2.bf16.msra.mxu0 0
    %1003 = vmatprep.subr.bf16.mxu0 0
    %1004 = vmatpush2.bf16.msra.mxu0 0
    %1005 = vmatprep.subr.bf16.mxu0 0
    %1006 = vmatpush2.bf16.msra.mxu0 0
    %1007 = vmatprep.mubr.bf16.mxu0 0
    %1008 = vmatmul.mubr.bf16.gmra.mxu0 %v973
    %v1009 = vpop.f32.mrf.mxu0
    %v1010 = vadd.f32 0.0, %v1009
    %v1011 = vpop.f32.mrf.mxu0
    %v1012 = vpop.f32.mrf.mxu0
    %v1013 = vpop.f32.mrf.mxu0
    %1014 = vdwg.mxu0
    %v1015 = vadd.f32 %v864, %v1010
    %v1016 = vxor.u32 %v1015, 2147483648
    %v1017 = vmul.f32 %v1016, 1.442695
    %v1018 = vpow.pop %v1017
    %v1019 = vadd.f32 %v1018, 1.0
    %v1020 = vrcp.pop %v1019
    %v1021 = vmul.f32 1.0, %v1020
    %v1022 = vtanh.pop %v1015
    %v1023 = vmul.f32 %v1021, %v961
    %1025 = vrot.lane.b32.xlu0 %v1022, 64
    %v1026 = vpop.permute.xlu0 %1025
    %v1028 = vmul.f32 %v1021, %v1026
    %1030 = vrot.lane.b32.xlu0 %v1028, 32
    %v1031 = vpop.permute.xlu0 %1030
    %v1033 = vadd.f32 %v1023, %v1031
    %v1034 = vtanh.pop %v1033
    %1036 = vrot.lane.b32.xlu0 %v1034, 64
    %v1037 = vpop.permute.xlu0 %1036
    %v1039 = vmul.f32 %v1021, %v1037
    %v1040 = vpack.c.bf16 %v1039, %v1039
    %1042 = vrot.lane.b32.xlu0 %v1040, 32
    %v1043 = vpop.permute.xlu0 %1042
    %v1045 = vsel %vm73, %v1043, 0
    %1047 = vmatprep.subr.bf16.mxu0 0
    %1048 = vmatpush1.bf16.msra.mxu0 0
    %1049 = vmatprep.subr.bf16.mxu0 0
    %1050 = vmatpush1.bf16.msra.mxu0 0
    %1051 = vmatprep.subr.bf16.mxu0 0
    %1052 = vmatpush1.bf16.msra.mxu0 0
    %1053 = vmatprep.subr.bf16.mxu0 0
    %1054 = vmatpush1.bf16.msra.mxu0 0
    %1055 = vmatprep.subr.bf16.mxu0 0
    %1056 = vmatpush1.bf16.msra.mxu0 0
    %1057 = vmatprep.subr.bf16.mxu0 0
    %1058 = vmatpush1.bf16.msra.mxu0 0
    %1059 = vmatprep.subr.bf16.mxu0 0
    %1060 = vmatpush1.bf16.msra.mxu0 %v900
    %1061 = vmatprep.subr.bf16.mxu0 0
    %1062 = vmatpush1.bf16.msra.mxu0 %v899
    %1063 = vmatprep.subr.bf16.mxu0 0
    %1064 = vmatpush2.bf16.msra.mxu0 0
    %1065 = vmatprep.subr.bf16.mxu0 0
    %1066 = vmatpush2.bf16.msra.mxu0 0
    %1067 = vmatprep.subr.bf16.mxu0 0
    %1068 = vmatpush2.bf16.msra.mxu0 0
    %1069 = vmatprep.subr.bf16.mxu0 0
    %1070 = vmatpush2.bf16.msra.mxu0 0
    %1071 = vmatprep.subr.bf16.mxu0 0
    %1072 = vmatpush2.bf16.msra.mxu0 0
    %1073 = vmatprep.subr.bf16.mxu0 0
    %1074 = vmatpush2.bf16.msra.mxu0 0
    %1075 = vmatprep.subr.bf16.mxu0 0
    %1076 = vmatpush2.bf16.msra.mxu0 0
    %1077 = vmatprep.subr.bf16.mxu0 0
    %1078 = vmatpush2.bf16.msra.mxu0 0
    %1079 = vmatprep.mubr.bf16.mxu0 0
    %1080 = vmatmul.mubr.bf16.gmra.mxu0 %v1045
    %v1081 = vpop.f32.mrf.mxu0
    %v1082 = vadd.f32 0.0, %v1081
    %v1083 = vpop.f32.mrf.mxu0
    %v1084 = vpop.f32.mrf.mxu0
    %v1085 = vpop.f32.mrf.mxu0
    %1086 = vdwg.mxu0
    %v1087 = vadd.f32 %v869, %v1082
    %v1088 = vxor.u32 %v1087, 2147483648
    %v1089 = vmul.f32 %v1088, 1.442695
    %v1090 = vpow.pop %v1089
    %v1091 = vadd.f32 %v1090, 1.0
    %v1092 = vrcp.pop %v1091
    %v1093 = vmul.f32 1.0, %v1092
    %v1094 = vtanh.pop %v1087
    %v1095 = vmul.f32 %v1093, %v1033
    %1097 = vrot.lane.b32.xlu0 %v1094, 64
    %v1098 = vpop.permute.xlu0 %1097
    %v1100 = vmul.f32 %v1093, %v1098
    %1102 = vrot.lane.b32.xlu0 %v1100, 32
    %v1103 = vpop.permute.xlu0 %1102
    %v1105 = vadd.f32 %v1095, %v1103
    %v1106 = vtanh.pop %v1105
    %1108 = vrot.lane.b32.xlu0 %v1106, 64
    %v1109 = vpop.permute.xlu0 %1108
    %v1111 = vmul.f32 %v1093, %v1109
    %v1112 = vpack.c.bf16 %v1111, %v1111
    %1114 = vrot.lane.b32.xlu0 %v1112, 32
    %v1115 = vpop.permute.xlu0 %1114
    %v1117 = vsel %vm73, %v1115, 0
    %1119 = vmatprep.subr.bf16.mxu0 0
    %1120 = vmatpush1.bf16.msra.mxu0 0
    %1121 = vmatprep.subr.bf16.mxu0 0
    %1122 = vmatpush1.bf16.msra.mxu0 0
    %1123 = vmatprep.subr.bf16.mxu0 0
    %1124 = vmatpush1.bf16.msra.mxu0 0
    %1125 = vmatprep.subr.bf16.mxu0 0
    %1126 = vmatpush1.bf16.msra.mxu0 0
    %1127 = vmatprep.subr.bf16.mxu0 0
    %1128 = vmatpush1.bf16.msra.mxu0 0
    %1129 = vmatprep.subr.bf16.mxu0 0
    %1130 = vmatpush1.bf16.msra.mxu0 0
    %1131 = vmatprep.subr.bf16.mxu0 0
    %1132 = vmatpush1.bf16.msra.mxu0 %v900
    %1133 = vmatprep.subr.bf16.mxu0 0
    %1134 = vmatpush1.bf16.msra.mxu0 %v899
    %1135 = vmatprep.subr.bf16.mxu0 0
    %1136 = vmatpush2.bf16.msra.mxu0 0
    %1137 = vmatprep.subr.bf16.mxu0 0
    %1138 = vmatpush2.bf16.msra.mxu0 0
    %1139 = vmatprep.subr.bf16.mxu0 0
    %1140 = vmatpush2.bf16.msra.mxu0 0
    %1141 = vmatprep.subr.bf16.mxu0 0
    %1142 = vmatpush2.bf16.msra.mxu0 0
    %1143 = vmatprep.subr.bf16.mxu0 0
    %1144 = vmatpush2.bf16.msra.mxu0 0
    %1145 = vmatprep.subr.bf16.mxu0 0
    %1146 = vmatpush2.bf16.msra.mxu0 0
    %1147 = vmatprep.subr.bf16.mxu0 0
    %1148 = vmatpush2.bf16.msra.mxu0 0
    %1149 = vmatprep.subr.bf16.mxu0 0
    %1150 = vmatpush2.bf16.msra.mxu0 0
    %1151 = vmatprep.mubr.bf16.mxu0 0
    %1152 = vmatmul.mubr.bf16.gmra.mxu0 %v1117
    %v1153 = vpop.f32.mrf.mxu0
    %v1154 = vadd.f32 0.0, %v1153
    %v1155 = vpop.f32.mrf.mxu0
    %v1156 = vpop.f32.mrf.mxu0
    %v1157 = vpop.f32.mrf.mxu0
    %1158 = vdwg.mxu0
    %v1159 = vadd.f32 %v872, %v1154
    %v1160 = vxor.u32 %v1159, 2147483648
    %v1161 = vmul.f32 %v1160, 1.442695
    %v1162 = vpow.pop %v1161
    %v1163 = vadd.f32 %v1162, 1.0
    %v1164 = vrcp.pop %v1163
    %v1165 = vmul.f32 1.0, %v1164
    %v1166 = vtanh.pop %v1159
    %v1167 = vmul.f32 %v1165, %v1105
    %1169 = vrot.lane.b32.xlu0 %v1166, 64
    %v1170 = vpop.permute.xlu0 %1169
    %v1172 = vmul.f32 %v1165, %v1170
    %1174 = vrot.lane.b32.xlu0 %v1172, 32
    %v1175 = vpop.permute.xlu0 %1174
    %v1177 = vadd.f32 %v1167, %v1175
    %v1178 = vtanh.pop %v1177
    %1180 = vrot.lane.b32.xlu0 %v1178, 64
    %v1181 = vpop.permute.xlu0 %1180
    %v1183 = vmul.f32 %v1165, %v1181
    %v1184 = vpack.c.bf16 %v1183, %v1183
    %1186 = vrot.lane.b32.xlu0 %v1184, 32
    %v1187 = vpop.permute.xlu0 %1186
    %v1189 = vsel %vm73, %v1187, 0
    %1191 = vmatprep.subr.bf16.mxu0 0
    %1192 = vmatpush1.bf16.msra.mxu0 0
    %1193 = vmatprep.subr.bf16.mxu0 0
    %1194 = vmatpush1.bf16.msra.mxu0 0
    %1195 = vmatprep.subr.bf16.mxu0 0
    %1196 = vmatpush1.bf16.msra.mxu0 0
    %1197 = vmatprep.subr.bf16.mxu0 0
    %1198 = vmatpush1.bf16.msra.mxu0 0
    %1199 = vmatprep.subr.bf16.mxu0 0
    %1200 = vmatpush1.bf16.msra.mxu0 0
    %1201 = vmatprep.subr.bf16.mxu0 0
    %1202 = vmatpush1.bf16.msra.mxu0 0
    %1203 = vmatprep.subr.bf16.mxu0 0
    %1204 = vmatpush1.bf16.msra.mxu0 %v900
    %1205 = vmatprep.subr.bf16.mxu0 0
    %1206 = vmatpush1.bf16.msra.mxu0 %v899
    %1207 = vmatprep.subr.bf16.mxu0 0
    %1208 = vmatpush2.bf16.msra.mxu0 0
    %1209 = vmatprep.subr.bf16.mxu0 0
    %1210 = vmatpush2.bf16.msra.mxu0 0
    %1211 = vmatprep.subr.bf16.mxu0 0
    %1212 = vmatpush2.bf16.msra.mxu0 0
    %1213 = vmatprep.subr.bf16.mxu0 0
    %1214 = vmatpush2.bf16.msra.mxu0 0
    %1215 = vmatprep.subr.bf16.mxu0 0
    %1216 = vmatpush2.bf16.msra.mxu0 0
    %1217 = vmatprep.subr.bf16.mxu0 0
    %1218 = vmatpush2.bf16.msra.mxu0 0
    %1219 = vmatprep.subr.bf16.mxu0 0
    %1220 = vmatpush2.bf16.msra.mxu0 0
    %1221 = vmatprep.subr.bf16.mxu0 0
    %1222 = vmatpush2.bf16.msra.mxu0 0
    %1223 = vmatprep.mubr.bf16.mxu0 0
    %1224 = vmatmul.mubr.bf16.gmra.mxu0 %v1189
    %v1225 = vpop.f32.mrf.mxu0
    %v1226 = vadd.f32 0.0, %v1225
    %v1227 = vpop.f32.mrf.mxu0
    %v1228 = vpop.f32.mrf.mxu0
    %v1229 = vpop.f32.mrf.mxu0
    %1230 = vdwg.mxu0
    %v1231 = vadd.f32 %v877, %v1226
    %v1232 = vxor.u32 %v1231, 2147483648
    %v1233 = vmul.f32 %v1232, 1.442695
    %v1234 = vpow.pop %v1233
    %v1235 = vadd.f32 %v1234, 1.0
    %v1236 = vrcp.pop %v1235
    %v1237 = vmul.f32 1.0, %v1236
    %v1238 = vtanh.pop %v1231
    %v1239 = vmul.f32 %v1237, %v1177
    %1241 = vrot.lane.b32.xlu0 %v1238, 64
    %v1242 = vpop.permute.xlu0 %1241
    %v1244 = vmul.f32 %v1237, %v1242
    %1246 = vrot.lane.b32.xlu0 %v1244, 32
    %v1247 = vpop.permute.xlu0 %1246
    %v1249 = vadd.f32 %v1239, %v1247
    %v1250 = vtanh.pop %v1249
    %1252 = vrot.lane.b32.xlu0 %v1250, 64
    %v1253 = vpop.permute.xlu0 %1252
    %v1255 = vmul.f32 %v1237, %v1253
    %v1256 = vpack.c.bf16 %v1255, %v1255
    %1258 = vrot.lane.b32.xlu0 %v1256, 32
    %v1259 = vpop.permute.xlu0 %1258
    %v1261 = vsel %vm73, %v1259, 0
    %1263 = vmatprep.subr.bf16.mxu0 0
    %1264 = vmatpush1.bf16.msra.mxu0 0
    %1265 = vmatprep.subr.bf16.mxu0 0
    %1266 = vmatpush1.bf16.msra.mxu0 0
    %1267 = vmatprep.subr.bf16.mxu0 0
    %1268 = vmatpush1.bf16.msra.mxu0 0
    %1269 = vmatprep.subr.bf16.mxu0 0
    %1270 = vmatpush1.bf16.msra.mxu0 0
    %1271 = vmatprep.subr.bf16.mxu0 0
    %1272 = vmatpush1.bf16.msra.mxu0 0
    %1273 = vmatprep.subr.bf16.mxu0 0
    %1274 = vmatpush1.bf16.msra.mxu0 0
    %1275 = vmatprep.subr.bf16.mxu0 0
    %1276 = vmatpush1.bf16.msra.mxu0 %v900
    %1277 = vmatprep.subr.bf16.mxu0 0
    %1278 = vmatpush1.bf16.msra.mxu0 %v899
    %1279 = vmatprep.subr.bf16.mxu0 0
    %1280 = vmatpush2.bf16.msra.mxu0 0
    %1281 = vmatprep.subr.bf16.mxu0 0
    %1282 = vmatpush2.bf16.msra.mxu0 0
    %1283 = vmatprep.subr.bf16.mxu0 0
    %1284 = vmatpush2.bf16.msra.mxu0 0
    %1285 = vmatprep.subr.bf16.mxu0 0
    %1286 = vmatpush2.bf16.msra.mxu0 0
    %1287 = vmatprep.subr.bf16.mxu0 0
    %1288 = vmatpush2.bf16.msra.mxu0 0
    %1289 = vmatprep.subr.bf16.mxu0 0
    %1290 = vmatpush2.bf16.msra.mxu0 0
    %1291 = vmatprep.subr.bf16.mxu0 0
    %1292 = vmatpush2.bf16.msra.mxu0 0
    %1293 = vmatprep.subr.bf16.mxu0 0
    %1294 = vmatpush2.bf16.msra.mxu0 0
    %1295 = vmatprep.mubr.bf16.mxu0 0
    %1296 = vmatmul.mubr.bf16.gmra.mxu0 %v1261
    %v1297 = vpop.f32.mrf.mxu0
    %v1298 = vadd.f32 0.0, %v1297
    %v1299 = vpop.f32.mrf.mxu0
    %v1300 = vpop.f32.mrf.mxu0
    %v1301 = vpop.f32.mrf.mxu0
    %1302 = vdwg.mxu0
    %v1303 = vadd.f32 %v880, %v1298
    %v1304 = vxor.u32 %v1303, 2147483648
    %v1305 = vmul.f32 %v1304, 1.442695
    %v1306 = vpow.pop %v1305
    %v1307 = vadd.f32 %v1306, 1.0
    %v1308 = vrcp.pop %v1307
    %v1309 = vmul.f32 1.0, %v1308
    %v1310 = vtanh.pop %v1303
    %v1311 = vmul.f32 %v1309, %v1249
    %1313 = vrot.lane.b32.xlu0 %v1310, 64
    %v1314 = vpop.permute.xlu0 %1313
    %v1316 = vmul.f32 %v1309, %v1314
    %1318 = vrot.lane.b32.xlu0 %v1316, 32
    %v1319 = vpop.permute.xlu0 %1318
    %v1321 = vadd.f32 %v1311, %v1319
    %v1322 = vtanh.pop %v1321
    %1324 = vrot.lane.b32.xlu0 %v1322, 64
    %v1325 = vpop.permute.xlu0 %1324
    %v1327 = vmul.f32 %v1309, %v1325
    %v1328 = vpack.c.bf16 %v1327, %v1327
    %1330 = vrot.lane.b32.xlu0 %v1328, 32
    %v1331 = vpop.permute.xlu0 %1330
    %v1333 = vsel %vm73, %v1331, 0
    %1335 = vmatprep.subr.bf16.mxu0 0
    %1336 = vmatpush1.bf16.msra.mxu0 0
    %1337 = vmatprep.subr.bf16.mxu0 0
    %1338 = vmatpush1.bf16.msra.mxu0 0
    %1339 = vmatprep.subr.bf16.mxu0 0
    %1340 = vmatpush1.bf16.msra.mxu0 0
    %1341 = vmatprep.subr.bf16.mxu0 0
    %1342 = vmatpush1.bf16.msra.mxu0 0
    %1343 = vmatprep.subr.bf16.mxu0 0
    %1344 = vmatpush1.bf16.msra.mxu0 0
    %1345 = vmatprep.subr.bf16.mxu0 0
    %1346 = vmatpush1.bf16.msra.mxu0 0
    %1347 = vmatprep.subr.bf16.mxu0 0
    %1348 = vmatpush1.bf16.msra.mxu0 %v900
    %1349 = vmatprep.subr.bf16.mxu0 0
    %1350 = vmatpush1.bf16.msra.mxu0 %v899
    %1351 = vmatprep.subr.bf16.mxu0 0
    %1352 = vmatpush2.bf16.msra.mxu0 0
    %1353 = vmatprep.subr.bf16.mxu0 0
    %1354 = vmatpush2.bf16.msra.mxu0 0
    %1355 = vmatprep.subr.bf16.mxu0 0
    %1356 = vmatpush2.bf16.msra.mxu0 0
    %1357 = vmatprep.subr.bf16.mxu0 0
    %1358 = vmatpush2.bf16.msra.mxu0 0
    %1359 = vmatprep.subr.bf16.mxu0 0
    %1360 = vmatpush2.bf16.msra.mxu0 0
    %1361 = vmatprep.subr.bf16.mxu0 0
    %1362 = vmatpush2.bf16.msra.mxu0 0
    %1363 = vmatprep.subr.bf16.mxu0 0
    %1364 = vmatpush2.bf16.msra.mxu0 0
    %1365 = vmatprep.subr.bf16.mxu0 0
    %1366 = vmatpush2.bf16.msra.mxu0 0
    %1367 = vmatprep.mubr.bf16.mxu0 0
    %1368 = vmatmul.mubr.bf16.gmra.mxu0 %v1333
    %v1369 = vpop.f32.mrf.mxu0
    %v1370 = vadd.f32 0.0, %v1369
    %v1371 = vpop.f32.mrf.mxu0
    %v1372 = vpop.f32.mrf.mxu0
    %v1373 = vpop.f32.mrf.mxu0
    %1374 = vdwg.mxu0
    %v1375 = vadd.f32 %v885, %v1370
    %v1376 = vxor.u32 %v1375, 2147483648
    %v1377 = vmul.f32 %v1376, 1.442695
    %v1378 = vpow.pop %v1377
    %v1379 = vadd.f32 %v1378, 1.0
    %v1380 = vrcp.pop %v1379
    %v1381 = vmul.f32 1.0, %v1380
    %v1382 = vtanh.pop %v1375
    %v1383 = vmul.f32 %v1381, %v1321
    %1385 = vrot.lane.b32.xlu0 %v1382, 64
    %v1386 = vpop.permute.xlu0 %1385
    %v1388 = vmul.f32 %v1381, %v1386
    %1390 = vrot.lane.b32.xlu0 %v1388, 32
    %v1391 = vpop.permute.xlu0 %1390
    %v1393 = vadd.f32 %v1383, %v1391
    %v1394 = vtanh.pop %v1393
    %1396 = vrot.lane.b32.xlu0 %v1394, 64
    %v1397 = vpop.permute.xlu0 %1396
    %v1399 = vmul.f32 %v1381, %v1397
    %v1400 = vpack.c.bf16 %v1399, %v1399
    %1402 = vrot.lane.b32.xlu0 %v1400, 32
    %v1403 = vpop.permute.xlu0 %1402
    %v1405 = vsel %vm73, %v1403, 0
    %1407 = vmatprep.subr.bf16.mxu0 0
    %1408 = vmatpush1.bf16.msra.mxu0 0
    %1409 = vmatprep.subr.bf16.mxu0 0
    %1410 = vmatpush1.bf16.msra.mxu0 0
    %1411 = vmatprep.subr.bf16.mxu0 0
    %1412 = vmatpush1.bf16.msra.mxu0 0
    %1413 = vmatprep.subr.bf16.mxu0 0
    %1414 = vmatpush1.bf16.msra.mxu0 0
    %1415 = vmatprep.subr.bf16.mxu0 0
    %1416 = vmatpush1.bf16.msra.mxu0 0
    %1417 = vmatprep.subr.bf16.mxu0 0
    %1418 = vmatpush1.bf16.msra.mxu0 0
    %1419 = vmatprep.subr.bf16.mxu0 0
    %1420 = vmatpush1.bf16.msra.mxu0 %v900
    %1421 = vmatprep.subr.bf16.mxu0 0
    %1422 = vmatpush1.bf16.msra.mxu0 %v899
    %1423 = vmatprep.subr.bf16.mxu0 0
    %1424 = vmatpush2.bf16.msra.mxu0 0
    %1425 = vmatprep.subr.bf16.mxu0 0
    %1426 = vmatpush2.bf16.msra.mxu0 0
    %1427 = vmatprep.subr.bf16.mxu0 0
    %1428 = vmatpush2.bf16.msra.mxu0 0
    %1429 = vmatprep.subr.bf16.mxu0 0
    %1430 = vmatpush2.bf16.msra.mxu0 0
    %1431 = vmatprep.subr.bf16.mxu0 0
    %1432 = vmatpush2.bf16.msra.mxu0 0
    %1433 = vmatprep.subr.bf16.mxu0 0
    %1434 = vmatpush2.bf16.msra.mxu0 0
    %1435 = vmatprep.subr.bf16.mxu0 0
    %1436 = vmatpush2.bf16.msra.mxu0 0
    %1437 = vmatprep.subr.bf16.mxu0 0
    %1438 = vmatpush2.bf16.msra.mxu0 0
    %1439 = vmatprep.mubr.bf16.mxu0 0
    %1440 = vmatmul.mubr.bf16.gmra.mxu0 %v1405
    %v1441 = vpop.f32.mrf.mxu0
    %v1442 = vadd.f32 0.0, %v1441
    %v1443 = vpop.f32.mrf.mxu0
    %v1444 = vpop.f32.mrf.mxu0
    %v1445 = vpop.f32.mrf.mxu0
    %1446 = vdwg.mxu0
    %v1447 = vadd.f32 %v888, %v1442
    %v1448 = vxor.u32 %v1447, 2147483648
    %v1449 = vmul.f32 %v1448, 1.442695
    %v1450 = vpow.pop %v1449
    %v1451 = vadd.f32 %v1450, 1.0
    %v1452 = vrcp.pop %v1451
    %v1453 = vmul.f32 1.0, %v1452
    %v1454 = vtanh.pop %v1447
    %v1455 = vmul.f32 %v1453, %v1393
    %1457 = vrot.lane.b32.xlu0 %v1454, 64
    %v1458 = vpop.permute.xlu0 %1457
    %v1460 = vmul.f32 %v1453, %v1458
    %1462 = vrot.lane.b32.xlu0 %v1460, 32
    %v1463 = vpop.permute.xlu0 %1462
    %v1465 = vadd.f32 %v1455, %v1463
    %v1466 = vtanh.pop %v1465
    %1468 = vrot.lane.b32.xlu0 %v1466, 64
    %v1469 = vpop.permute.xlu0 %1468
    %v1471 = vmul.f32 %v1453, %v1469
    %v1472 = vpack.c.bf16 %v1471, %v1471
    %v1473 = vld [vmem:[%s7] sm:$0xf]
    %v1474 = vld [vmem:[%s7 + $0x4] sm:$0xf]
    %v1475 = vld [vmem:[%s7 + $0x8] sm:$0xf]
    %v1476 = vld [vmem:[%s7 + $0xc] sm:$0xf]
    %v1477 = vld [vmem:[%s8] sm:$0x1]
    %v1479 = vlaneseq
    %v1480 = vshrl.u32 %v1479, 7
    %v1481 = vsub.s32 0, %v1480
    %v1482 = vrot.slane %v1477, %v1481
    %1485 = vrot.lane.b32.xlu0 %v1472, 32
    %v1486 = vpop.permute.xlu0 %1485
    %v1491 = vunpack.c.l.b16 %v1473
    %v1492 = vunpack.c.l.b16 %v1474
    %v1493 = vunpack.c.l.b16 %v1475
    %v1494 = vunpack.c.l.b16 %v1476
    %v1495 = vpack.c.b16 %v1492, %v1491
    %v1496 = vpack.c.b16 %v1494, %v1493
    %v1500 = vsel %vm73, %v1486, 0
    %1502 = vmatprep.subr.bf16.mxu0 0
    %1503 = vmatpush1.bf16.msra.mxu0 0
    %1504 = vmatprep.subr.bf16.mxu0 0
    %1505 = vmatpush1.bf16.msra.mxu0 0
    %1506 = vmatprep.subr.bf16.mxu0 0
    %1507 = vmatpush1.bf16.msra.mxu0 0
    %1508 = vmatprep.subr.bf16.mxu0 0
    %1509 = vmatpush1.bf16.msra.mxu0 0
    %1510 = vmatprep.subr.bf16.mxu0 0
    %1511 = vmatpush1.bf16.msra.mxu0 0
    %1512 = vmatprep.subr.bf16.mxu0 0
    %1513 = vmatpush1.bf16.msra.mxu0 0
    %1514 = vmatprep.subr.bf16.mxu0 0
    %1515 = vmatpush1.bf16.msra.mxu0 %v1496
    %1516 = vmatprep.subr.bf16.mxu0 0
    %1517 = vmatpush1.bf16.msra.mxu0 %v1495
    %1518 = vmatprep.subr.bf16.mxu0 0
    %1519 = vmatpush2.bf16.msra.mxu0 0
    %1520 = vmatprep.subr.bf16.mxu0 0
    %1521 = vmatpush2.bf16.msra.mxu0 0
    %1522 = vmatprep.subr.bf16.mxu0 0
    %1523 = vmatpush2.bf16.msra.mxu0 0
    %1524 = vmatprep.subr.bf16.mxu0 0
    %1525 = vmatpush2.bf16.msra.mxu0 0
    %1526 = vmatprep.subr.bf16.mxu0 0
    %1527 = vmatpush2.bf16.msra.mxu0 0
    %1528 = vmatprep.subr.bf16.mxu0 0
    %1529 = vmatpush2.bf16.msra.mxu0 0
    %1530 = vmatprep.subr.bf16.mxu0 0
    %1531 = vmatpush2.bf16.msra.mxu0 0
    %1532 = vmatprep.subr.bf16.mxu0 0
    %1533 = vmatpush2.bf16.msra.mxu0 0
    %1534 = vmatprep.mubr.bf16.mxu0 0
    %1535 = vmatmul.mubr.bf16.gmra.mxu0 %v1500
    %v1536 = vpop.f32.mrf.mxu0
    %v1537 = vadd.f32 %v1482, %v1536
    %v1538 = vpop.f32.mrf.mxu0
    %v1539 = vpop.f32.mrf.mxu0
    %v1540 = vpop.f32.mrf.mxu0
    %1541 = vdwg.mxu0
    %1542 = vst [vmem:[#allocation3] sm:$0xff] %v1537
    // Predicated region
    $region38: #{recunet_forward.1} parent=1 // pred_check
      _
    $region39: #{recunet_forward.1} parent=1 // pred_check_branch
      %1544 = sbr.rel (0) target = $region41
    $region40: #{recunet_forward.1} parent=1 // pred_region
      %s1546 = ssub.s32 128, 128
      %1547 = vsyncadd [#allocation4], %s1546
      %s1549 = sshll.u32 [#allocation3], 4
      %s1550 = int_to_ptr.vmem [resolvable:$true] %s1549
      %1552 = dma.vmem_to_hbm [thread:$0]  %s1550, 128, %s9, [#allocation4]
    $region41: #{recunet_forward.1} parent=1 // pred_fallthru
      _
    // Predicated region
    $region42: #{recunet_forward.1} parent=1 // pred_check
      _
    $region43: #{recunet_forward.1} parent=1 // pred_check_branch
      %1554 = sbr.rel (0) target = $region45
    $region44: #{recunet_forward.1} parent=1 // pred_region
      %1555 = dma.done [#allocation4], 128
    $region45: #{recunet_forward.1} parent=1 // pred_fallthru
      _
    %1556 = vsyncpa [#allocation4], 1

</llo_original>
